<compile_context>
chip_gen: v5e
topology: v5e:2x2
jax: 0.10.0
libtpu: 0.0.40
codegen_flags: <defaults>
</compile_context>

<pallas_src>
import functools

import jax
import jax.numpy as jnp
import numpy as np
from jax.experimental import pallas as pl
from jax.experimental.pallas import tpu as pltpu


# ----------------------------------------------------------------------------- #
# Kernel 1: point MLP (shared conv trunk) + running max over points
# ----------------------------------------------------------------------------- #
def point_mlp_kernel(x_ref, w1_ref, t1_ref,
                     w2_ref, t2_ref,
                     w3_ref, t3_ref,
                     feat_ref, *, bn3_relu):
    """Grid = (batch, point-chunks).

    x_ref:   (1, tn, Cin) bf16   chunk of points for this batch element
    w1_ref:  (1, Cin, 64) bf16   conv1 weight, BN scale (and trans, if any) folded
    w2_ref:  (64, 128)    bf16   conv2 weight, BN scale folded
    w3_ref:  (128, 1024)  bf16   conv3 weight, BN scale folded
    tK_ref:  (1, Cout_k)  f32    folded BN shift (conv bias included)
    feat_ref:(1, 1, 1024) f32    output block = running max-pooled global feature
    """
    nk = pl.program_id(1)

    @pl.when(nk == 0)
    def _():
        feat_ref[...] = jnp.full_like(feat_ref, -jnp.inf)

    # TODO(synk): the K=3 first matmul underfills the MXU; could be replaced by
    # 3 broadcast FMAs on the VPU if it ever shows up in a profile.
    x = x_ref[0]                                                     # (tn, Cin)
    h = jnp.dot(x, w1_ref[0], preferred_element_type=jnp.float32)    # (tn, 64)
    h = jnp.maximum(h + t1_ref[...], 0.0)
    h = jnp.dot(h.astype(jnp.bfloat16), w2_ref[...],
                preferred_element_type=jnp.float32)                  # (tn, 128)
    h = jnp.maximum(h + t2_ref[...], 0.0)
    h = jnp.dot(h.astype(jnp.bfloat16), w3_ref[...],
                preferred_element_type=jnp.float32)                  # (tn, 1024)
    h = h + t3_ref[...]
    if bn3_relu:
        h = jnp.maximum(h, 0.0)
    feat_ref[0] = jnp.maximum(feat_ref[0],
                              jnp.max(h, axis=0, keepdims=True))     # (1, 1024)


# ----------------------------------------------------------------------------- #
# Kernel 2: FC head, batched over all B rows at once (single invocation)
# ----------------------------------------------------------------------------- #
def fc_head_kernel(feat_ref, w1_ref, t1_ref,
                   w2_ref, t2_ref,
                   w3_ref, b3_ref, out_ref):
    """feat_ref: (B, 1024) f32;  out_ref: (B, k_pad) f32 (lane-padded logits)."""
    g = jnp.dot(feat_ref[...].astype(jnp.bfloat16), w1_ref[...],
                preferred_element_type=jnp.float32)                  # (B, 512)
    g = jnp.maximum(g + t1_ref[...], 0.0)
    # TODO(synk): nn.Dropout(p=0.3) treated as identity (inference semantics).
    g = jnp.dot(g.astype(jnp.bfloat16), w2_ref[...],
                preferred_element_type=jnp.float32)                  # (B, 256)
    g = jnp.maximum(g + t2_ref[...], 0.0)
    out_ref[...] = (jnp.dot(g.astype(jnp.bfloat16), w3_ref[...],
                            preferred_element_type=jnp.float32)
                    + b3_ref[...])                                   # (B, k_pad)


# ----------------------------------------------------------------------------- #
# Wrappers
# ----------------------------------------------------------------------------- #
def point_mlp(pts, w1p, mlp_p, *, bn3_relu, per_batch_w1, n_chunk=None,
              vmem_limit_bytes=32 * 1024 * 1024):
    """pts: (B, N, Cin) bf16, w1p: (Bw, Cin, 64) bf16 -> (B, 1024) f32 pooled feature."""
    B, N, Cin = pts.shape
    C1 = w1p.shape[-1]
    Cmid = mlp_p["w3s"].shape[1]                 # 1024

    if n_chunk is None:
        n_chunk = min(N, 512)                    # sweepable; bounds the (tn,1024) f32 tile
    # TODO(synk): padding for N % n_chunk != 0 would need -inf masking of padded
    # rows (bn3_relu=False branch can be all-negative), so we require divisibility.
    assert N % n_chunk == 0, "N must be a multiple of the point-chunk size"
    n_steps = N // n_chunk

    kernel = functools.partial(point_mlp_kernel, bn3_relu=bn3_relu)
    full = lambda a: pl.BlockSpec(a.shape, lambda b, n, _nd=a.ndim: (0,) * _nd)
    w1_idx = (lambda b, n: (b, 0, 0)) if per_batch_w1 else (lambda b, n: (0, 0, 0))

    feat = pl.pallas_call(
        kernel,
        out_shape=jax.ShapeDtypeStruct((B, 1, Cmid), jnp.float32),
        grid=(B, n_steps),
        in_specs=[
            pl.BlockSpec((1, n_chunk, Cin), lambda b, n: (b, n, 0)),
            pl.BlockSpec((1, Cin, C1), w1_idx),
            full(mlp_p["t1"]),
            full(mlp_p["w2s"]), full(mlp_p["t2"]),
            full(mlp_p["w3s"]), full(mlp_p["t3"]),
        ],
        out_specs=pl.BlockSpec((1, 1, Cmid), lambda b, n: (b, 0, 0)),
        compiler_params=pltpu.CompilerParams(
            dimension_semantics=("parallel", "arbitrary"),
            vmem_limit_bytes=vmem_limit_bytes),
    )(pts, w1p,
      mlp_p["t1"], mlp_p["w2s"], mlp_p["t2"], mlp_p["w3s"], mlp_p["t3"])
    return feat.reshape(B, Cmid)


def fc_head(feat, fc_p):
    """feat: (B, 1024) f32 -> (B, k_pad) f32 logits (lane-padded)."""
    B = feat.shape[0]
    k_pad = fc_p["w3p"].shape[1]
    args = (feat, fc_p["w1s"], fc_p["t1"], fc_p["w2s"], fc_p["t2"],
            fc_p["w3p"], fc_p["b3p"])
    out = pl.pallas_call(
        fc_head_kernel,
        out_shape=jax.ShapeDtypeStruct((B, k_pad), jnp.float32),
        grid=(1,),
        in_specs=[pl.BlockSpec(a.shape, lambda i, _nd=a.ndim: (0,) * _nd)
                  for a in args],
        out_specs=pl.BlockSpec((B, k_pad), lambda i: (0, 0)),
        compiler_params=pltpu.CompilerParams(
            dimension_semantics=("arbitrary",)),
    )(*args)
    return out


# ----------------------------------------------------------------------------- #
# Parameter construction (deterministic, synthetic; BN stats + scale folded)
# ----------------------------------------------------------------------------- #
def _init_bn_layer(key, cin, cout, eps=1e-5):
    """Conv1d(k=1)/Linear + BatchNorm1d, folded for inference.

    Returns (w_scaled (cin,cout) f32 with BN scale folded into the columns,
             shift (1,cout) f32 with the conv/linear bias folded in).
    """
    kw, kb, kg, kbe, km, kv = jax.random.split(key, 6)
    w = jax.random.normal(kw, (cout, cin), jnp.float32) / np.sqrt(cin)
    b = 0.1 * jax.random.normal(kb, (cout,), jnp.float32)
    gamma = 1.0 + 0.1 * jax.random.normal(kg, (cout,), jnp.float32)
    beta = 0.1 * jax.random.normal(kbe, (cout,), jnp.float32)
    mean = 0.1 * jax.random.normal(km, (cout,), jnp.float32)
    var = 0.9 + 0.1 * jnp.abs(jax.random.normal(kv, (cout,), jnp.float32))
    scale = gamma / jnp.sqrt(var + eps)
    shift = beta - mean * scale
    w_scaled = w.T * scale[None, :]                 # (cin, cout), scale folded
    t = (b * scale + shift)[None, :]                # (1, cout)
    return w_scaled, t


def make_mlp_params(key, c_in):
    k1, k2, k3 = jax.random.split(key, 3)
    # conv1 kept in f32 so the per-batch trans fold happens in f32.
    w1s, t1 = _init_bn_layer(k1, c_in, 64)
    w2s, t2 = _init_bn_layer(k2, 64, 128)
    w3s, t3 = _init_bn_layer(k3, 128, 1024)
    return dict(w1s=w1s, t1=t1,
                w2s=w2s.astype(jnp.bfloat16), t2=t2,
                w3s=w3s.astype(jnp.bfloat16), t3=t3)


def make_fc_params(key, k_out, lane_pad=128):
    k1, k2, k3 = jax.random.split(key, 3)
    w1s, t1 = _init_bn_layer(k1, 1024, 512)
    w2s, t2 = _init_bn_layer(k2, 512, 256)
    kw, kb = jax.random.split(k3, 2)
    w3 = jax.random.normal(kw, (k_out, 256), jnp.float32) / np.sqrt(256)
    b3 = 0.1 * jax.random.normal(kb, (k_out,), jnp.float32)
    k_pad = max(lane_pad, ((k_out + lane_pad - 1) // lane_pad) * lane_pad)
    w3p = jnp.zeros((256, k_pad), jnp.float32).at[:, :k_out].set(w3.T)
    b3p = jnp.zeros((1, k_pad), jnp.float32).at[:, :k_out].set(b3[None, :])
    return dict(w1s=w1s.astype(jnp.bfloat16), t1=t1,
                w2s=w2s.astype(jnp.bfloat16), t2=t2,
                w3p=w3p.astype(jnp.bfloat16), b3p=b3p, k_out=k_out)


def make_pointnet_params(key, k=9):
    ks = jax.random.split(key, 4)
    return dict(
        stn_mlp=make_mlp_params(ks[0], 3),
        stn_fc=make_fc_params(ks[1], 9),
        mlp=make_mlp_params(ks[2], 3),
        fc=make_fc_params(ks[3], k),
    )


# ----------------------------------------------------------------------------- #
# Forward pass (glue)
# ----------------------------------------------------------------------------- #
def pointnet_cls_forward(x, params, *, n_chunk=None):
    """x: (B, 3, N) float32  ->  (logits (B, k), trans (B, 3, 3))."""
    B, D, N = x.shape
    pts3 = jnp.transpose(x, (0, 2, 1))[..., :3].astype(jnp.bfloat16)   # (B, N, 3)

    # ---- STN3d branch: shared conv1 weight (constant index_map, no broadcast) ----
    stn_w1 = params["stn_mlp"]["w1s"].astype(jnp.bfloat16)[None]        # (1, 3, 64)
    stn_feat = point_mlp(pts3, stn_w1, params["stn_mlp"],
                         bn3_relu=True, per_batch_w1=False, n_chunk=n_chunk)
    stn_out = fc_head(stn_feat, params["stn_fc"])[:, :9]                # (B, 9)
    trans = (stn_out + jnp.eye(3, dtype=jnp.float32).flatten()).reshape(B, 3, 3)

    # ---- Main branch: fold (pts @ trans) @ W1s == pts @ (trans @ W1s) into conv1 ----
    w1p = jnp.einsum("bij,jk->bik", trans,
                     params["mlp"]["w1s"]).astype(jnp.bfloat16)         # (B, 3, 64)
    feat = point_mlp(pts3, w1p, params["mlp"],
                     bn3_relu=False, per_batch_w1=True, n_chunk=n_chunk)
    k_out = params["fc"]["k_out"]
    logits = fc_head(feat, params["fc"])[:, :k_out]                     # (B, k)
    return logits, trans


# ----------------------------------------------------------------------------- #
if __name__ == "__main__":
    key = jax.random.PRNGKey(0)
    k_params, k_x = jax.random.split(key)

    B, D, N = 2, 3, 128                        # normal_channel=False -> D=3
    x = jax.random.normal(k_x, (B, D, N), jnp.float32)
    params = make_pointnet_params(k_params, k=9)

    logits, trans = pointnet_cls_forward(x, params)
    jax.block_until_ready((logits, trans))

    assert logits.shape == (B, 9) and trans.shape == (B, 3, 3)
    assert bool(jnp.all(jnp.isfinite(logits))) and bool(jnp.all(jnp.isfinite(trans)))
    print("KERNEL_OK")
</pallas_src>

<mosaic_0001>
module attributes {stable_mosaic.version = 11 : i64} {
  func.func @point_mlp_kernel(%arg0: i32, %arg1: i32, %arg2: memref<1x128x3xbf16, #tpu.memory_space<vmem>>, %arg3: memref<1x3x64xbf16, #tpu.memory_space<vmem>>, %arg4: memref<1x64xf32, #tpu.memory_space<vmem>>, %arg5: memref<64x128xbf16, #tpu.memory_space<vmem>>, %arg6: memref<1x128xf32, #tpu.memory_space<vmem>>, %arg7: memref<128x1024xbf16, #tpu.memory_space<vmem>>, %arg8: memref<1x1024xf32, #tpu.memory_space<vmem>>, %arg9: memref<1x1x1024xf32, #tpu.memory_space<vmem>>) attributes {dimension_semantics = [#tpu.dimension_semantics<parallel>, #tpu.dimension_semantics<arbitrary>], iteration_bounds = array<i64: 2, 1>, scalar_prefetch = 0 : i64, scratch_operands = 0 : i64, tpu.core_type = #tpu.core_type<tc>, window_params = [{transform_indices = @transform_0, window_bounds = array<i64: 1, 128, 3>}, {pipeline_mode = #tpu.pipeline_mode<synchronous>, transform_indices = @transform_1, window_bounds = array<i64: 1, 3, 64>}, {pipeline_mode = #tpu.pipeline_mode<synchronous>, transform_indices = @transform_2, window_bounds = array<i64: 1, 64>}, {pipeline_mode = #tpu.pipeline_mode<synchronous>, transform_indices = @transform_3, window_bounds = array<i64: 64, 128>}, {pipeline_mode = #tpu.pipeline_mode<synchronous>, transform_indices = @transform_4, window_bounds = array<i64: 1, 128>}, {pipeline_mode = #tpu.pipeline_mode<synchronous>, transform_indices = @transform_5, window_bounds = array<i64: 128, 1024>}, {pipeline_mode = #tpu.pipeline_mode<synchronous>, transform_indices = @transform_6, window_bounds = array<i64: 1, 1024>}, {transform_indices = @transform_7, window_bounds = array<i64: 1, 1, 1024>}]} {
    %c0_i32 = arith.constant 0 : i32
    %0 = arith.cmpi eq, %arg1, %c0_i32 : i32
    %1 = arith.extui %0 : i1 to i32
    %c0_i32_0 = arith.constant 0 : i32
    %2 = arith.cmpi ne, %1, %c0_i32_0 : i32
    scf.if %2 {
      %cst_28 = arith.constant 0xFF800000 : f32
      %37 = vector.broadcast %cst_28 : f32 to vector<1x1x1024xf32>
      %c0_29 = arith.constant 0 : index
      %c0_30 = arith.constant 0 : index
      %c0_31 = arith.constant 0 : index
      %38 = vector.load %arg9[%c0_29, %c0_30, %c0_31] : memref<1x1x1024xf32, #tpu.memory_space<vmem>>, vector<1x1x1024xf32>
      tpu.vector_store %arg9[%c0_29, %c0_30, %c0_31], %37 {strides = array<i32>} : memref<1x1x1024xf32, #tpu.memory_space<vmem>>, vector<1x1x1024xf32>,
    } else {
    }
    %c0 = arith.constant 0 : index
    %c0_1 = arith.constant 0 : index
    %c0_2 = arith.constant 0 : index
    %3 = vector.load %arg2[%c0, %c0_1, %c0_2] : memref<1x128x3xbf16, #tpu.memory_space<vmem>>, vector<1x128x3xbf16>
    %4 = vector.shape_cast %3 : vector<1x128x3xbf16> to vector<128x3xbf16>
    %c0_3 = arith.constant 0 : index
    %c0_4 = arith.constant 0 : index
    %c0_5 = arith.constant 0 : index
    %5 = vector.load %arg3[%c0_3, %c0_4, %c0_5] : memref<1x3x64xbf16, #tpu.memory_space<vmem>>, vector<1x3x64xbf16>
    %6 = vector.shape_cast %5 : vector<1x3x64xbf16> to vector<3x64xbf16>
    %cst = arith.constant dense<0.000000e+00> : vector<128x64xf32>
    %7 = tpu.matmul %4, %6, %cst {dimension_numbers = #tpu.dot_dimension_numbers<[1], [0], [0], [1], [0, 0, 1, 1], [], []>} : vector<128x3xbf16>, vector<3x64xbf16>, vector<128x64xf32> -> vector<128x64xf32>
    %c0_6 = arith.constant 0 : index
    %c0_7 = arith.constant 0 : index
    %8 = vector.load %arg4[%c0_6, %c0_7] : memref<1x64xf32, #tpu.memory_space<vmem>>, vector<1x64xf32>
    %9 = vector.broadcast %8 : vector<1x64xf32> to vector<128x64xf32>
    %10 = arith.addf %7, %9 : vector<128x64xf32>
    %cst_8 = arith.constant 0.000000e+00 : f32
    %11 = vector.broadcast %cst_8 : f32 to vector<128x64xf32>
    %12 = arith.maximumf %10, %11 : vector<128x64xf32>
    %13 = arith.truncf %12 : vector<128x64xf32> to vector<128x64xbf16>
    %c0_9 = arith.constant 0 : index
    %c0_10 = arith.constant 0 : index
    %14 = vector.load %arg5[%c0_9, %c0_10] : memref<64x128xbf16, #tpu.memory_space<vmem>>, vector<64x128xbf16>
    %cst_11 = arith.constant dense<0.000000e+00> : vector<128x128xf32>
    %15 = tpu.matmul %13, %14, %cst_11 {dimension_numbers = #tpu.dot_dimension_numbers<[1], [0], [0], [1], [0, 0, 1, 1], [], []>} : vector<128x64xbf16>, vector<64x128xbf16>, vector<128x128xf32> -> vector<128x128xf32>
    %c0_12 = arith.constant 0 : index
    %c0_13 = arith.constant 0 : index
    %16 = vector.load %arg6[%c0_12, %c0_13] : memref<1x128xf32, #tpu.memory_space<vmem>>, vector<1x128xf32>
    %17 = vector.broadcast %16 : vector<1x128xf32> to vector<128x128xf32>
    %18 = arith.addf %15, %17 : vector<128x128xf32>
    %cst_14 = arith.constant 0.000000e+00 : f32
    %19 = vector.broadcast %cst_14 : f32 to vector<128x128xf32>
    %20 = arith.maximumf %18, %19 : vector<128x128xf32>
    %21 = arith.truncf %20 : vector<128x128xf32> to vector<128x128xbf16>
    %c0_15 = arith.constant 0 : index
    %c0_16 = arith.constant 0 : index
    %22 = vector.load %arg7[%c0_15, %c0_16] : memref<128x1024xbf16, #tpu.memory_space<vmem>>, vector<128x1024xbf16>
    %cst_17 = arith.constant dense<0.000000e+00> : vector<128x1024xf32>
    %23 = tpu.matmul %21, %22, %cst_17 {dimension_numbers = #tpu.dot_dimension_numbers<[1], [0], [0], [1], [0, 0, 1, 1], [], []>} : vector<128x128xbf16>, vector<128x1024xbf16>, vector<128x1024xf32> -> vector<128x1024xf32>
    %c0_18 = arith.constant 0 : index
    %c0_19 = arith.constant 0 : index
    %24 = vector.load %arg8[%c0_18, %c0_19] : memref<1x1024xf32, #tpu.memory_space<vmem>>, vector<1x1024xf32>
    %25 = vector.broadcast %24 : vector<1x1024xf32> to vector<128x1024xf32>
    %26 = arith.addf %23, %25 : vector<128x1024xf32>
    %cst_20 = arith.constant 0.000000e+00 : f32
    %27 = vector.broadcast %cst_20 : f32 to vector<128x1024xf32>
    %28 = arith.maximumf %26, %27 : vector<128x1024xf32>
    %c0_21 = arith.constant 0 : index
    %c0_22 = arith.constant 0 : index
    %c0_23 = arith.constant 0 : index
    %29 = vector.load %arg9[%c0_21, %c0_22, %c0_23] : memref<1x1x1024xf32, #tpu.memory_space<vmem>>, vector<1x1x1024xf32>
    %30 = vector.shape_cast %29 : vector<1x1x1024xf32> to vector<1x1024xf32>
    %cst_24 = arith.constant dense<0xFF800000> : vector<1024xf32>
    %31 = vector.multi_reduction <maximumf>, %28, %cst_24 [0] : vector<128x1024xf32> to vector<1024xf32>
    %32 = vector.shape_cast %31 : vector<1024xf32> to vector<1x1024xf32>
    %33 = arith.maximumf %30, %32 : vector<1x1024xf32>
    %c0_25 = arith.constant 0 : index
    %c0_26 = arith.constant 0 : index
    %c0_27 = arith.constant 0 : index
    %34 = vector.load %arg9[%c0_25, %c0_26, %c0_27] : memref<1x1x1024xf32, #tpu.memory_space<vmem>>, vector<1x1x1024xf32>
    %35 = vector.shape_cast %34 : vector<1x1x1024xf32> to vector<1x1024xf32>
    %36 = vector.shape_cast %33 : vector<1x1024xf32> to vector<1x1x1024xf32>
    tpu.vector_store %arg9[%c0_25, %c0_26, %c0_27], %36 {strides = array<i32>} : memref<1x1x1024xf32, #tpu.memory_space<vmem>>, vector<1x1x1024xf32>,
    return
  }
  func.func @transform_0(%arg0: i32, %arg1: i32) -> (i32, i32, i32) {
    %c0_i32 = arith.constant 0 : i32
    %c0_i32_0 = arith.constant 0 : i32
    return %arg0, %arg1, %c0_i32 : i32, i32, i32
  }
  func.func @transform_1(%arg0: i32, %arg1: i32) -> (i32, i32, i32) {
    %c0_i32 = arith.constant 0 : i32
    %c0_i32_0 = arith.constant 0 : i32
    %c0_i32_1 = arith.constant 0 : i32
    %c0_i32_2 = arith.constant 0 : i32
    return %c0_i32, %c0_i32_0, %c0_i32_1 : i32, i32, i32
  }
  func.func @transform_2(%arg0: i32, %arg1: i32) -> (i32, i32) {
    %c0_i32 = arith.constant 0 : i32
    %c0_i32_0 = arith.constant 0 : i32
    %c0_i32_1 = arith.constant 0 : i32
    return %c0_i32, %c0_i32_0 : i32, i32
  }
  func.func @transform_3(%arg0: i32, %arg1: i32) -> (i32, i32) {
    %c0_i32 = arith.constant 0 : i32
    %c0_i32_0 = arith.constant 0 : i32
    %c0_i32_1 = arith.constant 0 : i32
    return %c0_i32, %c0_i32_0 : i32, i32
  }
  func.func @transform_4(%arg0: i32, %arg1: i32) -> (i32, i32) {
    %c0_i32 = arith.constant 0 : i32
    %c0_i32_0 = arith.constant 0 : i32
    %c0_i32_1 = arith.constant 0 : i32
    return %c0_i32, %c0_i32_0 : i32, i32
  }
  func.func @transform_5(%arg0: i32, %arg1: i32) -> (i32, i32) {
    %c0_i32 = arith.constant 0 : i32
    %c0_i32_0 = arith.constant 0 : i32
    %c0_i32_1 = arith.constant 0 : i32
    return %c0_i32, %c0_i32_0 : i32, i32
  }
  func.func @transform_6(%arg0: i32, %arg1: i32) -> (i32, i32) {
    %c0_i32 = arith.constant 0 : i32
    %c0_i32_0 = arith.constant 0 : i32
    %c0_i32_1 = arith.constant 0 : i32
    return %c0_i32, %c0_i32_0 : i32, i32
  }
  func.func @transform_7(%arg0: i32, %arg1: i32) -> (i32, i32, i32) {
    %c0_i32 = arith.constant 0 : i32
    %c0_i32_0 = arith.constant 0 : i32
    %c0_i32_1 = arith.constant 0 : i32
    return %arg0, %c0_i32, %c0_i32_0 : i32, i32, i32
  }
}

</mosaic_0001>

<llo_original>
// kernel: tpu_custom_call.1
$region0: #{tpu_custom_call.1}
  #allocation0 [shape = 'u32[]', space=smem, size = 0x4, offset = 0x4, fixed_abs, tag = 'smem constant byte address 0x4 - core index']
  #allocation1 [shape = 'u32[72,128]{1,0:T(1,128)}', space=vmem, size = 0x9000, scoped, tag = 'internal scratch']
  %s0 = inlined_call_operand.vmem [shape: bf16[2,128,3], index: 0, kind: input, shape index: {}]
  %s1 = inlined_call_operand.vmem [shape: bf16[1,3,64], index: 1, kind: input, shape index: {}]
  %s2 = inlined_call_operand.vmem [shape: f32[1,64], index: 2, kind: input, shape index: {}]
  %s3 = inlined_call_operand.vmem [shape: bf16[64,128], index: 3, kind: input, shape index: {}]
  %s4 = inlined_call_operand.vmem [shape: f32[1,128], index: 4, kind: input, shape index: {}]
  %s5 = inlined_call_operand.hbm [shape: bf16[128,1024], index: 5, kind: input, shape index: {}]
  %s6 = inlined_call_operand.vmem [shape: f32[1,1024], index: 6, kind: input, shape index: {}]
  %s7 = inlined_call_operand.hbm [shape: f32[2,1,1024], index: 7, kind: output, shape index: {}]
  %s8 = sld [smem:[#allocation0]]
  $region69: #{tpu_custom_call.1} parent=0
    _
  %s10 = ssub.s32 1, %s8
  %s11 = scalar_select 0, %s10, %s8
  $region1: #{tpu_custom_call.1} parent=0
    #allocation2 [shape = 'u8[262144]{0}', space=vmem, size = 0x40000, scoped, tag = 'input window, operand 5, single buffered']
    #allocation3 [shape = 's32[2]{0}', space=sflag, size = 0x8, scoped, tag = 'scoped memory for tpu_custom_call.1']
    #allocation4 [shape = 's32[2]{0}', space=sflag, size = 0x8, scoped, tag = 'scoped memory for tpu_custom_call.1']
    #allocation5 [shape = 'u8[8192]{0}', space=vmem, size = 0x2000, scoped, tag = 'output window, operand 0']
    %12 = vsyncpa [#allocation3], 0
    %13 = vsyncpa [#allocation4], 0
    %s14 = scalar_lea.sflag [#allocation4], 1
    %15 = vsyncpa %s14, 0
    loop: start=0, step=1, limit=4
    $region2: #{tpu_custom_call.1} parent=1 // loop_pre_header
      _
    $region3: #{tpu_custom_call.1} parent=1 // loop_header
      %s17 = sphi 0, %s21
      %p18 = scmp.ge.s32.totalorder %s17, 4
      %s24 = sphi 0, %s36
      %s25 = sphi 0, %s32
      %s26 = sphi 0, %s24
      %s27 = sphi 0, %s25
      %s28 = sphi 0, %s26
      %s29 = sphi 0, %s27
      %s41 = sphi 0, %s43
      %s44 = sphi 0, %s41
      %s45 = sphi 0, %s44
      %s61 = sphi 0, %s45
      %s65 = sphi 0, %s65
      %s67 = sphi 0, %s65
      %s68 = sphi 0, %s67
      %s82 = sphi 0, %s68
      %s86 = sphi 0, %s86
      %s88 = sphi 0, %s86
      %s89 = sphi 0, %s88
      %s103 = sphi 0, %s89
      %s107 = sphi 0, %s107
      %s109 = sphi 0, %s107
      %s110 = sphi 0, %s109
      %s124 = sphi 0, %s110
      %s128 = sphi 0, %s128
      %s130 = sphi 0, %s128
      %s131 = sphi 0, %s130
      %s145 = sphi 0, %s131
      %s149 = sphi 0, %s149
      %s151 = sphi 0, %s149
      %s152 = sphi 0, %s151
      %s166 = sphi 0, %s152
      %s170 = sphi 0, %s170
      %s172 = sphi 0, %s170
      %s173 = sphi 0, %s172
      %s187 = sphi 0, %s173
      %s193 = sphi 0, %s195
      %s196 = sphi 0, %s193
      %s197 = sphi 0, %s196
      %s213 = sphi 0, %s197
    $region4: #{tpu_custom_call.1} parent=1 // loop_header_branch
      %20 = sbr.rel (%p18) target = $region8
    $region5: #{tpu_custom_call.1} parent=1 // loop_body
      %s22 = ssub.s32 %s17, 1
      %s23 = ssub.s32 %s17, 2
      %s30 = sadd.s32 1, %s25
      %p31 = scmp.ge.s32.totalorder %s30, 1
      %s32 = scalar_select %p31, 0, %s30
      %s33 = sadd.s32 1, %s24
      %s34 = scalar_select %p31, %s33, %s24
      %p35 = scmp.ge.s32.totalorder %s34, 2
      %s36 = scalar_select %p35, 0, %s34
      %s37 = ssub.s32 %s24, %s36
      %s38 = ssub.s32 %s25, %s32
      %s39 = sor.u32 %s37, %s38
      %p40 = scmp.eq.s32.totalorder %s39, 0
      %s42 = sadd.s32 %s41, 1
      %s43 = scalar_select %p40, %s41, %s42
      %p46 = pneg %p40
      %p47 = scmp.eq.s32.totalorder %s17, 1
      %p48 = por %p46, %p47
      %p49 = scmp.ne.s32.totalorder %s41, %s44
      %p50 = scmp.eq.s32.totalorder %s17, 0
      %p51 = por %p49, %p50
      %p52 = scmp.ne.s32.totalorder %s41, %s44
      %p53 = scmp.eq.s32.totalorder %s22, 1
      %p54 = por %p52, %p53
      %p55 = scmp.ne.s32.totalorder %s44, %s45
      %p56 = scmp.eq.s32.totalorder %s22, 0
      %p57 = por %p55, %p56
      %p58 = scmp.ne.s32.totalorder %s44, %s45
      %p59 = scmp.eq.s32.totalorder %s23, 1
      %p60 = por %p58, %p59
      %p62 = scmp.ne.s32.totalorder %s45, %s61
      %p63 = scmp.eq.s32.totalorder %s23, 0
      %p64 = por %p62, %p63
      %s66 = sadd.s32 %s65, 1
      %p69 = scmp.eq.s32.totalorder %s17, 1
      %p70 = scmp.ne.s32.totalorder %s65, %s67
      %p71 = scmp.eq.s32.totalorder %s17, 0
      %p72 = por %p70, %p71
      %p73 = scmp.ne.s32.totalorder %s65, %s67
      %p74 = scmp.eq.s32.totalorder %s22, 1
      %p75 = por %p73, %p74
      %p76 = scmp.ne.s32.totalorder %s67, %s68
      %p77 = scmp.eq.s32.totalorder %s22, 0
      %p78 = por %p76, %p77
      %p79 = scmp.ne.s32.totalorder %s67, %s68
      %p80 = scmp.eq.s32.totalorder %s23, 1
      %p81 = por %p79, %p80
      %p83 = scmp.ne.s32.totalorder %s68, %s82
      %p84 = scmp.eq.s32.totalorder %s23, 0
      %p85 = por %p83, %p84
      %s87 = sadd.s32 %s86, 1
      %p90 = scmp.eq.s32.totalorder %s17, 1
      %p91 = scmp.ne.s32.totalorder %s86, %s88
      %p92 = scmp.eq.s32.totalorder %s17, 0
      %p93 = por %p91, %p92
      %p94 = scmp.ne.s32.totalorder %s86, %s88
      %p95 = scmp.eq.s32.totalorder %s22, 1
      %p96 = por %p94, %p95
      %p97 = scmp.ne.s32.totalorder %s88, %s89
      %p98 = scmp.eq.s32.totalorder %s22, 0
      %p99 = por %p97, %p98
      %p100 = scmp.ne.s32.totalorder %s88, %s89
      %p101 = scmp.eq.s32.totalorder %s23, 1
      %p102 = por %p100, %p101
      %p104 = scmp.ne.s32.totalorder %s89, %s103
      %p105 = scmp.eq.s32.totalorder %s23, 0
      %p106 = por %p104, %p105
      %s108 = sadd.s32 %s107, 1
      %p111 = scmp.eq.s32.totalorder %s17, 1
      %p112 = scmp.ne.s32.totalorder %s107, %s109
      %p113 = scmp.eq.s32.totalorder %s17, 0
      %p114 = por %p112, %p113
      %p115 = scmp.ne.s32.totalorder %s107, %s109
      %p116 = scmp.eq.s32.totalorder %s22, 1
      %p117 = por %p115, %p116
      %p118 = scmp.ne.s32.totalorder %s109, %s110
      %p119 = scmp.eq.s32.totalorder %s22, 0
      %p120 = por %p118, %p119
      %p121 = scmp.ne.s32.totalorder %s109, %s110
      %p122 = scmp.eq.s32.totalorder %s23, 1
      %p123 = por %p121, %p122
      %p125 = scmp.ne.s32.totalorder %s110, %s124
      %p126 = scmp.eq.s32.totalorder %s23, 0
      %p127 = por %p125, %p126
      %s129 = sadd.s32 %s128, 1
      %p132 = scmp.eq.s32.totalorder %s17, 1
      %p133 = scmp.ne.s32.totalorder %s128, %s130
      %p134 = scmp.eq.s32.totalorder %s17, 0
      %p135 = por %p133, %p134
      %p136 = scmp.ne.s32.totalorder %s128, %s130
      %p137 = scmp.eq.s32.totalorder %s22, 1
      %p138 = por %p136, %p137
      %p139 = scmp.ne.s32.totalorder %s130, %s131
      %p140 = scmp.eq.s32.totalorder %s22, 0
      %p141 = por %p139, %p140
      %p142 = scmp.ne.s32.totalorder %s130, %s131
      %p143 = scmp.eq.s32.totalorder %s23, 1
      %p144 = por %p142, %p143
      %p146 = scmp.ne.s32.totalorder %s131, %s145
      %p147 = scmp.eq.s32.totalorder %s23, 0
      %p148 = por %p146, %p147
      %s150 = sadd.s32 %s149, 1
      %p153 = scmp.eq.s32.totalorder %s17, 1
      %p154 = scmp.ne.s32.totalorder %s149, %s151
      %p155 = scmp.eq.s32.totalorder %s17, 0
      %p156 = por %p154, %p155
      %p157 = scmp.ne.s32.totalorder %s149, %s151
      %p158 = scmp.eq.s32.totalorder %s22, 1
      %p159 = por %p157, %p158
      %p160 = scmp.ne.s32.totalorder %s151, %s152
      %p161 = scmp.eq.s32.totalorder %s22, 0
      %p162 = por %p160, %p161
      %p163 = scmp.ne.s32.totalorder %s151, %s152
      %p164 = scmp.eq.s32.totalorder %s23, 1
      %p165 = por %p163, %p164
      %p167 = scmp.ne.s32.totalorder %s152, %s166
      %p168 = scmp.eq.s32.totalorder %s23, 0
      %p169 = por %p167, %p168
      %s171 = sadd.s32 %s170, 1
      %p174 = scmp.eq.s32.totalorder %s17, 1
      %p175 = scmp.ne.s32.totalorder %s170, %s172
      %p176 = scmp.eq.s32.totalorder %s17, 0
      %p177 = por %p175, %p176
      %p178 = scmp.ne.s32.totalorder %s170, %s172
      %p179 = scmp.eq.s32.totalorder %s22, 1
      %p180 = por %p178, %p179
      %p181 = scmp.ne.s32.totalorder %s172, %s173
      %p182 = scmp.eq.s32.totalorder %s22, 0
      %p183 = por %p181, %p182
      %p184 = scmp.ne.s32.totalorder %s172, %s173
      %p185 = scmp.eq.s32.totalorder %s23, 1
      %p186 = por %p184, %p185
      %p188 = scmp.ne.s32.totalorder %s173, %s187
      %p189 = scmp.eq.s32.totalorder %s23, 0
      %p190 = por %p188, %p189
      %s191 = ssub.s32 %s24, %s36
      %p192 = scmp.eq.s32.totalorder %s191, 0
      %s194 = sadd.s32 %s193, 1
      %s195 = scalar_select %p192, %s193, %s194
      %p198 = pneg %p192
      %p199 = scmp.eq.s32.totalorder %s17, 1
      %p200 = por %p198, %p199
      %p201 = scmp.ne.s32.totalorder %s193, %s196
      %p202 = scmp.eq.s32.totalorder %s17, 0
      %p203 = por %p201, %p202
      %p204 = scmp.ne.s32.totalorder %s193, %s196
      %p205 = scmp.eq.s32.totalorder %s22, 1
      %p206 = por %p204, %p205
      %p207 = scmp.ne.s32.totalorder %s196, %s197
      %p208 = scmp.eq.s32.totalorder %s22, 0
      %p209 = por %p207, %p208
      %p210 = scmp.ne.s32.totalorder %s196, %s197
      %p211 = scmp.eq.s32.totalorder %s23, 1
      %p212 = por %p210, %p211
      %p214 = scmp.ne.s32.totalorder %s197, %s213
      %p215 = scmp.eq.s32.totalorder %s23, 0
      %p216 = por %p214, %p215
      %p217 = scmp.le.s32.totalorder 1, %s17
      %p218 = scmp.lt.s32.totalorder %s17, 3
      %p219 = pnand %p217, %p218
      %p220 = pneg %p219
      // Predicated region
      $region9: #{tpu_custom_call.1} parent=5 // pred_check
        _
      $region10: #{tpu_custom_call.1} parent=5 // pred_check_branch
        %222 = sbr.rel (%p219) target = $region12
      $region11: #{tpu_custom_call.1} parent=5 // pred_region
        %s223 = ssub.s32 %s17, 1
        // Predicated region
        $region13: #{tpu_custom_call.1} parent=11 // pred_check
          %p224 = pneg %p78
        $region14: #{tpu_custom_call.1} parent=11 // pred_check_branch
          %226 = sbr.rel (%p224) target = $region16
        $region15: #{tpu_custom_call.1} parent=11 // pred_region
          _
        $region16: #{tpu_custom_call.1} parent=11 // pred_fallthru
          _
        // Predicated region
        $region17: #{tpu_custom_call.1} parent=11 // pred_check
          %p227 = pneg %p99
        $region18: #{tpu_custom_call.1} parent=11 // pred_check_branch
          %229 = sbr.rel (%p227) target = $region20
        $region19: #{tpu_custom_call.1} parent=11 // pred_region
          _
        $region20: #{tpu_custom_call.1} parent=11 // pred_fallthru
          _
        // Predicated region
        $region21: #{tpu_custom_call.1} parent=11 // pred_check
          %p230 = pneg %p120
        $region22: #{tpu_custom_call.1} parent=11 // pred_check_branch
          %232 = sbr.rel (%p230) target = $region24
        $region23: #{tpu_custom_call.1} parent=11 // pred_region
          _
        $region24: #{tpu_custom_call.1} parent=11 // pred_fallthru
          _
        // Predicated region
        $region25: #{tpu_custom_call.1} parent=11 // pred_check
          %p233 = pneg %p141
        $region26: #{tpu_custom_call.1} parent=11 // pred_check_branch
          %235 = sbr.rel (%p233) target = $region28
        $region27: #{tpu_custom_call.1} parent=11 // pred_region
          _
        $region28: #{tpu_custom_call.1} parent=11 // pred_fallthru
          _
        // Predicated region
        $region29: #{tpu_custom_call.1} parent=11 // pred_check
          %p236 = pneg %p162
        $region30: #{tpu_custom_call.1} parent=11 // pred_check_branch
          %238 = sbr.rel (%p236) target = $region32
        $region31: #{tpu_custom_call.1} parent=11 // pred_region
          %240 = vsyncadd [#allocation3], 0
          %s241 = sshll.u32 %s5, 4
          %s242 = int_to_ptr.hbm [resolvable:$true] %s241
          %s243 = sshll.u32 [#allocation2], 4
          %s244 = int_to_ptr.vmem [resolvable:$true] %s243
          %249 = dma.hbm_to_vmem [thread:$0]  %s242, 8192, %s244, [#allocation3], 512, 512, 32
        $region32: #{tpu_custom_call.1} parent=11 // pred_fallthru
          _
        // Predicated region
        $region33: #{tpu_custom_call.1} parent=11 // pred_check
          %p250 = pneg %p183
        $region34: #{tpu_custom_call.1} parent=11 // pred_check_branch
          %252 = sbr.rel (%p250) target = $region36
        $region35: #{tpu_custom_call.1} parent=11 // pred_region
          _
        $region36: #{tpu_custom_call.1} parent=11 // pred_fallthru
          _
      $region12: #{tpu_custom_call.1} parent=5 // pred_fallthru
        _
      %p253 = scmp.lt.s32.totalorder %s17, 2
      // Predicated region
      $region37: #{tpu_custom_call.1} parent=5 // pred_check
        %p254 = pneg %p253
      $region38: #{tpu_custom_call.1} parent=5 // pred_check_branch
        %256 = sbr.rel (%p254) target = $region40
      $region39: #{tpu_custom_call.1} parent=5 // pred_region
        // Predicated region
        $region41: #{tpu_custom_call.1} parent=39 // pred_check
          %p257 = pneg %p51
        $region42: #{tpu_custom_call.1} parent=39 // pred_check_branch
          %259 = sbr.rel (%p257) target = $region44
        $region43: #{tpu_custom_call.1} parent=39 // pred_region
          %s260 = smul.u32 16, %s25
          %p261 = scmp.lt.s32.totalorder %s24, 1
          %s262 = scalar_select %p261, %s24, 1
          %p263 = scmp.lt.s32.totalorder %s260, 15
          %s264 = scalar_select %p263, %s260, 15
          %s265 = smul.addr %s262, 16
          %s266 = sadd.s32 %s264, %s265
          %s267 = smul.addr %s266, 4
          %s268 = scalar_lea.vmem %s0, %s267
          %s269 = smul.u32 16, %s25
        $region44: #{tpu_custom_call.1} parent=39 // pred_fallthru
          _
      $region40: #{tpu_custom_call.1} parent=5 // pred_fallthru
        _
      %p270 = scmp.le.s32.totalorder 1, %s17
      %p271 = scmp.lt.s32.totalorder %s17, 3
      %p272 = pnand %p270, %p271
      %p273 = pneg %p272
      // Predicated region
      $region45: #{tpu_custom_call.1} parent=5 // pred_check
        _
      $region46: #{tpu_custom_call.1} parent=5 // pred_check_branch
        %275 = sbr.rel (%p272) target = $region48
      $region47: #{tpu_custom_call.1} parent=5 // pred_region
        %s276 = ssub.s32 %s17, 1
        // Predicated region
        $region49: #{tpu_custom_call.1} parent=47 // pred_check
          %p277 = pneg %p162
        $region50: #{tpu_custom_call.1} parent=47 // pred_check_branch
          %279 = sbr.rel (%p277) target = $region52
        $region51: #{tpu_custom_call.1} parent=47 // pred_region
          %281 = dma.done [#allocation3], 8192
        $region52: #{tpu_custom_call.1} parent=47 // pred_fallthru
          _
        %s282 = smul.u32 16, %s27
        %p283 = scmp.lt.s32.totalorder %s26, 1
        %s284 = scalar_select %p283, %s26, 1
        %p285 = scmp.lt.s32.totalorder %s282, 15
        %s286 = scalar_select %p285, %s282, 15
        %s287 = smul.addr %s284, 16
        %s288 = sadd.s32 %s286, %s287
        %s289 = smul.addr %s288, 4
        %s290 = scalar_lea.vmem %s0, %s289
        %p291 = pneg %p57
        %p292 = pneg %p54
        %p293 = pneg %p78
        %p294 = pneg %p75
        %p295 = pneg %p99
        %p296 = pneg %p96
        %p297 = pneg %p120
        %p298 = pneg %p117
        %p299 = pneg %p141
        %p300 = pneg %p138
        %p301 = pneg %p162
        %p302 = pneg %p159
        %p303 = pneg %p183
        %p304 = pneg %p180
        %p305 = pneg %p209
        %p306 = pneg %p206
        %s307 = sand.u32 %s196, 1
        %s308 = scalar_lea.sflag [#allocation4], %s307
        %s309 = sand.u32 %s196, 1
        %s310 = smul.addr %s309, 8
        %s311 = scalar_lea.vmem [#allocation5], %s310
        %s312 = smul.u32 16, %s27
        %p313 = scmp.lt.s32.totalorder %s26, 1
        %s314 = scalar_select %p313, %s26, 1
        %p315 = scmp.lt.s32.totalorder %s312, 15
        %s316 = scalar_select %p315, %s312, 15
        %s317 = smul.addr %s314, 16
        %s318 = sadd.s32 %s316, %s317
        %s319 = smul.addr %s318, 4
        %s320 = scalar_lea.vmem %s0, %s319
        %s321 = smul.u32 16, %s27
        %p323 = scmp.eq.s32.totalorder %s27, 0
        // Predicated region
        $region53: #{tpu_custom_call.1} parent=47 // pred_check
          %p324 = pneg %p323
        $region54: #{tpu_custom_call.1} parent=47 // pred_check_branch
          %326 = sbr.rel (%p324) target = $region56
        $region55: #{tpu_custom_call.1} parent=47 // pred_region
          %327 = vst [vmem:[%s311] sm:$0xff] -inf
        $region56: #{tpu_custom_call.1} parent=47 // pred_fallthru
          _
        %v328 = vld [vmem:[%s320] sm:$0xf]
        %v329 = vld [vmem:[%s320 + $0x4] sm:$0xf]
        %v330 = vld [vmem:[%s320 + $0x8] sm:$0xf]
        %v331 = vld [vmem:[%s320 + $0xc] sm:$0xf]
        %v332 = vld [vmem:[%s320 + $0x10] sm:$0xf]
        %v333 = vld [vmem:[%s320 + $0x14] sm:$0xf]
        %v334 = vld [vmem:[%s320 + $0x18] sm:$0xf]
        %v335 = vld [vmem:[%s320 + $0x1c] sm:$0xf]
        %v336 = vld [vmem:[%s320 + $0x20] sm:$0xf]
        %v337 = vld [vmem:[%s320 + $0x24] sm:$0xf]
        %v338 = vld [vmem:[%s320 + $0x28] sm:$0xf]
        %v339 = vld [vmem:[%s320 + $0x2c] sm:$0xf]
        %v340 = vld [vmem:[%s320 + $0x30] sm:$0xf]
        %v341 = vld [vmem:[%s320 + $0x34] sm:$0xf]
        %v342 = vld [vmem:[%s320 + $0x38] sm:$0xf]
        %v343 = vld [vmem:[%s320 + $0x3c] sm:$0xf]
        %v344 = vld [vmem:[%s1] sm:$0x3]
        %v345 = vld [vmem:[%s2] sm:$0x1]
        %v347 = vperm.slane %v345, 0
        %v365 = vunpack.c.l.b16 %v328
        %v366 = vunpack.c.l.b16 %v329
        %v367 = vunpack.c.l.b16 %v330
        %v368 = vunpack.c.l.b16 %v331
        %v369 = vunpack.c.l.b16 %v332
        %v370 = vunpack.c.l.b16 %v333
        %v371 = vunpack.c.l.b16 %v334
        %v372 = vunpack.c.l.b16 %v335
        %v373 = vunpack.c.l.b16 %v336
        %v374 = vunpack.c.l.b16 %v337
        %v375 = vunpack.c.l.b16 %v338
        %v376 = vunpack.c.l.b16 %v339
        %v377 = vunpack.c.l.b16 %v340
        %v378 = vunpack.c.l.b16 %v341
        %v379 = vunpack.c.l.b16 %v342
        %v380 = vunpack.c.l.b16 %v343
        %v381 = vpack.c.b16 %v366, %v365
        %v382 = vpack.c.b16 %v368, %v367
        %v383 = vpack.c.b16 %v370, %v369
        %v384 = vpack.c.b16 %v372, %v371
        %v385 = vpack.c.b16 %v374, %v373
        %v386 = vpack.c.b16 %v376, %v375
        %v387 = vpack.c.b16 %v378, %v377
        %v388 = vpack.c.b16 %v380, %v379
        %vm389 = vcmask 23552
        %v391 = vsel %vm389, %v381, 0
        %v394 = vsel %vm389, %v382, 0
        %v397 = vsel %vm389, %v383, 0
        %v400 = vsel %vm389, %v384, 0
        %v403 = vsel %vm389, %v385, 0
        %v406 = vsel %vm389, %v386, 0
        %v409 = vsel %vm389, %v387, 0
        %v412 = vsel %vm389, %v388, 0
        %vm414 = vcmask 1040384
        %vm415 = vcmask 1041408
        %v416 = vsel %vm414, 4294967295, 65535
        %v417 = vsel %vm415, %v416, 0
        %v419 = vand.u32 %v344, %v417
        %421 = vmatpush.bf16.msra.mxu0 0
        %422 = vmatpush.bf16.msra.mxu0 0
        %423 = vmatpush.bf16.msra.mxu0 0
        %424 = vmatpush.bf16.msra.mxu0 0
        %425 = vmatpush.bf16.msra.mxu0 0
        %426 = vmatpush.bf16.msra.mxu0 0
        %427 = vmatpush.bf16.msra.mxu0 0
        %428 = vmatpush.bf16.msra.mxu0 %v419
        %429 = vmatmul.bf16.gmra.mxu0 %v391
        %v430 = vpop.f32.mrf.mxu0
        %v431 = vadd.f32 %v347, %v430
        %v432 = vpop.f32.mrf.mxu0
        %v433 = vadd.f32 %v347, %v432
        %434 = vmatmul.bf16.gmra.mxu0 %v394
        %v435 = vpop.f32.mrf.mxu0
        %v436 = vadd.f32 %v347, %v435
        %v437 = vpop.f32.mrf.mxu0
        %v438 = vadd.f32 %v347, %v437
        %439 = vmatmul.bf16.gmra.mxu0 %v397
        %v440 = vpop.f32.mrf.mxu0
        %v441 = vadd.f32 %v347, %v440
        %v442 = vpop.f32.mrf.mxu0
        %v443 = vadd.f32 %v347, %v442
        %444 = vmatmul.bf16.gmra.mxu0 %v400
        %v445 = vpop.f32.mrf.mxu0
        %v446 = vadd.f32 %v347, %v445
        %v447 = vpop.f32.mrf.mxu0
        %v448 = vadd.f32 %v347, %v447
        %449 = vmatmul.bf16.gmra.mxu0 %v403
        %v450 = vpop.f32.mrf.mxu0
        %v451 = vadd.f32 %v347, %v450
        %v452 = vpop.f32.mrf.mxu0
        %v453 = vadd.f32 %v347, %v452
        %454 = vmatmul.bf16.gmra.mxu0 %v406
        %v455 = vpop.f32.mrf.mxu0
        %v456 = vadd.f32 %v347, %v455
        %v457 = vpop.f32.mrf.mxu0
        %v458 = vadd.f32 %v347, %v457
        %459 = vmatmul.bf16.gmra.mxu0 %v409
        %v460 = vpop.f32.mrf.mxu0
        %v461 = vadd.f32 %v347, %v460
        %v462 = vpop.f32.mrf.mxu0
        %v463 = vadd.f32 %v347, %v462
        %464 = vmatmul.bf16.gmra.mxu0 %v412
        %v465 = vpop.f32.mrf.mxu0
        %v466 = vadd.f32 %v347, %v465
        %v467 = vpop.f32.mrf.mxu0
        %v468 = vadd.f32 %v347, %v467
        %469 = vdwg.mxu0
        %v470 = vmax.f32 %v431, 0.0
        %v471 = vmax.f32 %v433, 0.0
        %v472 = vmax.f32 %v436, 0.0
        %v473 = vmax.f32 %v438, 0.0
        %v474 = vmax.f32 %v441, 0.0
        %v475 = vmax.f32 %v443, 0.0
        %v476 = vmax.f32 %v446, 0.0
        %v477 = vmax.f32 %v448, 0.0
        %v478 = vmax.f32 %v451, 0.0
        %v479 = vmax.f32 %v453, 0.0
        %v480 = vmax.f32 %v456, 0.0
        %v481 = vmax.f32 %v458, 0.0
        %v482 = vmax.f32 %v461, 0.0
        %v483 = vmax.f32 %v463, 0.0
        %v484 = vmax.f32 %v466, 0.0
        %v485 = vmax.f32 %v468, 0.0
        %v486 = vpack.c.bf16 %v471, %v470
        %v487 = vpack.c.bf16 %v473, %v472
        %v488 = vpack.c.bf16 %v475, %v474
        %v489 = vpack.c.bf16 %v477, %v476
        %v490 = vpack.c.bf16 %v479, %v478
        %v491 = vpack.c.bf16 %v481, %v480
        %v492 = vpack.c.bf16 %v483, %v482
        %v493 = vpack.c.bf16 %v485, %v484
        %v494 = vld [vmem:[%s3] sm:$0xf]
        %v495 = vld [vmem:[%s3 + $0x4] sm:$0xf]
        %v496 = vld [vmem:[%s3 + $0x8] sm:$0xf]
        %v497 = vld [vmem:[%s3 + $0xc] sm:$0xf]
        %v498 = vld [vmem:[%s3 + $0x10] sm:$0xf]
        %v499 = vld [vmem:[%s3 + $0x14] sm:$0xf]
        %v500 = vld [vmem:[%s3 + $0x18] sm:$0xf]
        %v501 = vld [vmem:[%s3 + $0x1c] sm:$0xf]
        %v502 = vld [vmem:[%s4] sm:$0x1]
        %v504 = vperm.slane %v502, 0
        %v514 = vunpack.c.l.b16 %v494
        %v515 = vunpack.c.l.b16 %v495
        %v516 = vunpack.c.l.b16 %v496
        %v517 = vunpack.c.l.b16 %v497
        %v518 = vunpack.c.l.b16 %v498
        %v519 = vunpack.c.l.b16 %v499
        %v520 = vunpack.c.l.b16 %v500
        %v521 = vunpack.c.l.b16 %v501
        %v522 = vpack.c.b16 %v515, %v514
        %v523 = vpack.c.b16 %v517, %v516
        %v524 = vpack.c.b16 %v519, %v518
        %v525 = vpack.c.b16 %v521, %v520
        %vm530 = vcmask 523264
        %v532 = vsel %vm530, %v486, 0
        %v535 = vsel %vm530, %v487, 0
        %v538 = vsel %vm530, %v488, 0
        %v541 = vsel %vm530, %v489, 0
        %v544 = vsel %vm530, %v490, 0
        %v547 = vsel %vm530, %v491, 0
        %v550 = vsel %vm530, %v492, 0
        %v553 = vsel %vm530, %v493, 0
        %555 = vmatpush.bf16.msra.mxu0 0
        %556 = vmatpush.bf16.msra.mxu0 0
        %557 = vmatpush.bf16.msra.mxu0 0
        %558 = vmatpush.bf16.msra.mxu0 0
        %559 = vmatpush.bf16.msra.mxu0 %v525
        %560 = vmatpush.bf16.msra.mxu0 %v524
        %561 = vmatpush.bf16.msra.mxu0 %v523
        %562 = vmatpush.bf16.msra.mxu0 %v522
        %563 = vmatmul.bf16.gmra.mxu0 %v532
        %v564 = vpop.f32.mrf.mxu0
        %v565 = vadd.f32 %v504, %v564
        %v566 = vpop.f32.mrf.mxu0
        %v567 = vadd.f32 %v504, %v566
        %568 = vmatmul.bf16.gmra.mxu0 %v535
        %v569 = vpop.f32.mrf.mxu0
        %v570 = vadd.f32 %v504, %v569
        %v571 = vpop.f32.mrf.mxu0
        %v572 = vadd.f32 %v504, %v571
        %573 = vmatmul.bf16.gmra.mxu0 %v538
        %v574 = vpop.f32.mrf.mxu0
        %v575 = vadd.f32 %v504, %v574
        %v576 = vpop.f32.mrf.mxu0
        %v577 = vadd.f32 %v504, %v576
        %578 = vmatmul.bf16.gmra.mxu0 %v541
        %v579 = vpop.f32.mrf.mxu0
        %v580 = vadd.f32 %v504, %v579
        %v581 = vpop.f32.mrf.mxu0
        %v582 = vadd.f32 %v504, %v581
        %583 = vmatmul.bf16.gmra.mxu0 %v544
        %v584 = vpop.f32.mrf.mxu0
        %v585 = vadd.f32 %v504, %v584
        %v586 = vpop.f32.mrf.mxu0
        %v587 = vadd.f32 %v504, %v586
        %588 = vmatmul.bf16.gmra.mxu0 %v547
        %v589 = vpop.f32.mrf.mxu0
        %v590 = vadd.f32 %v504, %v589
        %v591 = vpop.f32.mrf.mxu0
        %v592 = vadd.f32 %v504, %v591
        %593 = vmatmul.bf16.gmra.mxu0 %v550
        %v594 = vpop.f32.mrf.mxu0
        %v595 = vadd.f32 %v504, %v594
        %v596 = vpop.f32.mrf.mxu0
        %v597 = vadd.f32 %v504, %v596
        %598 = vmatmul.bf16.gmra.mxu0 %v553
        %v599 = vpop.f32.mrf.mxu0
        %v600 = vadd.f32 %v504, %v599
        %v601 = vpop.f32.mrf.mxu0
        %v602 = vadd.f32 %v504, %v601
        %603 = vdwg.mxu0
        %v604 = vmax.f32 %v565, 0.0
        %v605 = vmax.f32 %v567, 0.0
        %v606 = vmax.f32 %v570, 0.0
        %v607 = vmax.f32 %v572, 0.0
        %v608 = vmax.f32 %v575, 0.0
        %v609 = vmax.f32 %v577, 0.0
        %v610 = vmax.f32 %v580, 0.0
        %v611 = vmax.f32 %v582, 0.0
        %v612 = vmax.f32 %v585, 0.0
        %v613 = vmax.f32 %v587, 0.0
        %v614 = vmax.f32 %v590, 0.0
        %v615 = vmax.f32 %v592, 0.0
        %v616 = vmax.f32 %v595, 0.0
        %v617 = vmax.f32 %v597, 0.0
        %v618 = vmax.f32 %v600, 0.0
        %v619 = vmax.f32 %v602, 0.0
        %v620 = vpack.c.bf16 %v605, %v604
        %v621 = vpack.c.bf16 %v607, %v606
        %v622 = vpack.c.bf16 %v609, %v608
        %v623 = vpack.c.bf16 %v611, %v610
        %v624 = vpack.c.bf16 %v613, %v612
        %v625 = vpack.c.bf16 %v615, %v614
        %v626 = vpack.c.bf16 %v617, %v616
        %v627 = vpack.c.bf16 %v619, %v618
        %v628 = vld [vmem:[#allocation2] sm:$0xff]
        %v629 = vld [vmem:[#allocation2 + $0x8] sm:$0xff]
        %v630 = vld [vmem:[#allocation2 + $0x10] sm:$0xff]
        %v631 = vld [vmem:[#allocation2 + $0x18] sm:$0xff]
        %v632 = vld [vmem:[#allocation2 + $0x20] sm:$0xff]
        %v633 = vld [vmem:[#allocation2 + $0x28] sm:$0xff]
        %v634 = vld [vmem:[#allocation2 + $0x30] sm:$0xff]
        %v635 = vld [vmem:[#allocation2 + $0x38] sm:$0xff]
        %v636 = vld [vmem:[#allocation2 + $0x40] sm:$0xff]
        %v637 = vld [vmem:[#allocation2 + $0x48] sm:$0xff]
        %v638 = vld [vmem:[#allocation2 + $0x50] sm:$0xff]
        %v639 = vld [vmem:[#allocation2 + $0x58] sm:$0xff]
        %v640 = vld [vmem:[#allocation2 + $0x60] sm:$0xff]
        %v641 = vld [vmem:[#allocation2 + $0x68] sm:$0xff]
        %v642 = vld [vmem:[#allocation2 + $0x70] sm:$0xff]
        %v643 = vld [vmem:[#allocation2 + $0x78] sm:$0xff]
        %v644 = vld [vmem:[#allocation2 + $0x80] sm:$0xff]
        %v645 = vld [vmem:[#allocation2 + $0x88] sm:$0xff]
        %v646 = vld [vmem:[#allocation2 + $0x90] sm:$0xff]
        %v647 = vld [vmem:[#allocation2 + $0x98] sm:$0xff]
        %v648 = vld [vmem:[#allocation2 + $0xa0] sm:$0xff]
        %v649 = vld [vmem:[#allocation2 + $0xa8] sm:$0xff]
        %v650 = vld [vmem:[#allocation2 + $0xb0] sm:$0xff]
        %v651 = vld [vmem:[#allocation2 + $0xb8] sm:$0xff]
        %v652 = vld [vmem:[#allocation2 + $0xc0] sm:$0xff]
        %v653 = vld [vmem:[#allocation2 + $0xc8] sm:$0xff]
        %v654 = vld [vmem:[#allocation2 + $0xd0] sm:$0xff]
        %v655 = vld [vmem:[#allocation2 + $0xd8] sm:$0xff]
        %v656 = vld [vmem:[#allocation2 + $0xe0] sm:$0xff]
        %v657 = vld [vmem:[#allocation2 + $0xe8] sm:$0xff]
        %v658 = vld [vmem:[#allocation2 + $0xf0] sm:$0xff]
        %v659 = vld [vmem:[#allocation2 + $0xf8] sm:$0xff]
        %v660 = vld [vmem:[#allocation2 + $0x100] sm:$0xff]
        %v661 = vld [vmem:[#allocation2 + $0x108] sm:$0xff]
        %v662 = vld [vmem:[#allocation2 + $0x110] sm:$0xff]
        %v663 = vld [vmem:[#allocation2 + $0x118] sm:$0xff]
        %v664 = vld [vmem:[#allocation2 + $0x120] sm:$0xff]
        %v665 = vld [vmem:[#allocation2 + $0x128] sm:$0xff]
        %v666 = vld [vmem:[#allocation2 + $0x130] sm:$0xff]
        %v667 = vld [vmem:[#allocation2 + $0x138] sm:$0xff]
        %v668 = vld [vmem:[#allocation2 + $0x140] sm:$0xff]
        %v669 = vld [vmem:[#allocation2 + $0x148] sm:$0xff]
        %v670 = vld [vmem:[#allocation2 + $0x150] sm:$0xff]
        %v671 = vld [vmem:[#allocation2 + $0x158] sm:$0xff]
        %v672 = vld [vmem:[#allocation2 + $0x160] sm:$0xff]
        %v673 = vld [vmem:[#allocation2 + $0x168] sm:$0xff]
        %v674 = vld [vmem:[#allocation2 + $0x170] sm:$0xff]
        %v675 = vld [vmem:[#allocation2 + $0x178] sm:$0xff]
        %v676 = vld [vmem:[#allocation2 + $0x180] sm:$0xff]
        %v677 = vld [vmem:[#allocation2 + $0x188] sm:$0xff]
        %v678 = vld [vmem:[#allocation2 + $0x190] sm:$0xff]
        %v679 = vld [vmem:[#allocation2 + $0x198] sm:$0xff]
        %v680 = vld [vmem:[#allocation2 + $0x1a0] sm:$0xff]
        %v681 = vld [vmem:[#allocation2 + $0x1a8] sm:$0xff]
        %v682 = vld [vmem:[#allocation2 + $0x1b0] sm:$0xff]
        %v683 = vld [vmem:[#allocation2 + $0x1b8] sm:$0xff]
        %v684 = vld [vmem:[#allocation2 + $0x1c0] sm:$0xff]
        %v685 = vld [vmem:[#allocation2 + $0x1c8] sm:$0xff]
        %v686 = vld [vmem:[#allocation2 + $0x1d0] sm:$0xff]
        %v687 = vld [vmem:[#allocation2 + $0x1d8] sm:$0xff]
        %v688 = vld [vmem:[#allocation2 + $0x1e0] sm:$0xff]
        %v689 = vld [vmem:[#allocation2 + $0x1e8] sm:$0xff]
        %v690 = vld [vmem:[#allocation2 + $0x1f0] sm:$0xff]
        %v691 = vld [vmem:[#allocation2 + $0x1f8] sm:$0xff]
        %v692 = vld [vmem:[%s6] sm:$0xff]
        %v694 = vperm.slane %v692, 0
        %v695 = vperm.slane %v692, 1
        %v696 = vperm.slane %v692, 2
        %v697 = vperm.slane %v692, 3
        %v698 = vperm.slane %v692, 4
        %v699 = vperm.slane %v692, 5
        %v700 = vperm.slane %v692, 6
        %v701 = vperm.slane %v692, 7
        %v774 = vunpack.c.l.b16 %v628
        %v775 = vunpack.c.h.b16 %v628
        %v776 = vunpack.c.l.b16 %v629
        %v777 = vunpack.c.h.b16 %v629
        %v778 = vunpack.c.l.b16 %v630
        %v779 = vunpack.c.h.b16 %v630
        %v780 = vunpack.c.l.b16 %v631
        %v781 = vunpack.c.h.b16 %v631
        %v782 = vunpack.c.l.b16 %v632
        %v783 = vunpack.c.h.b16 %v632
        %v784 = vunpack.c.l.b16 %v633
        %v785 = vunpack.c.h.b16 %v633
        %v786 = vunpack.c.l.b16 %v634
        %v787 = vunpack.c.h.b16 %v634
        %v788 = vunpack.c.l.b16 %v635
        %v789 = vunpack.c.h.b16 %v635
        %v790 = vunpack.c.l.b16 %v636
        %v791 = vunpack.c.h.b16 %v636
        %v792 = vunpack.c.l.b16 %v637
        %v793 = vunpack.c.h.b16 %v637
        %v794 = vunpack.c.l.b16 %v638
        %v795 = vunpack.c.h.b16 %v638
        %v796 = vunpack.c.l.b16 %v639
        %v797 = vunpack.c.h.b16 %v639
        %v798 = vunpack.c.l.b16 %v640
        %v799 = vunpack.c.h.b16 %v640
        %v800 = vunpack.c.l.b16 %v641
        %v801 = vunpack.c.h.b16 %v641
        %v802 = vunpack.c.l.b16 %v642
        %v803 = vunpack.c.h.b16 %v642
        %v804 = vunpack.c.l.b16 %v643
        %v805 = vunpack.c.h.b16 %v643
        %v806 = vunpack.c.l.b16 %v644
        %v807 = vunpack.c.h.b16 %v644
        %v808 = vunpack.c.l.b16 %v645
        %v809 = vunpack.c.h.b16 %v645
        %v810 = vunpack.c.l.b16 %v646
        %v811 = vunpack.c.h.b16 %v646
        %v812 = vunpack.c.l.b16 %v647
        %v813 = vunpack.c.h.b16 %v647
        %v814 = vunpack.c.l.b16 %v648
        %v815 = vunpack.c.h.b16 %v648
        %v816 = vunpack.c.l.b16 %v649
        %v817 = vunpack.c.h.b16 %v649
        %v818 = vunpack.c.l.b16 %v650
        %v819 = vunpack.c.h.b16 %v650
        %v820 = vunpack.c.l.b16 %v651
        %v821 = vunpack.c.h.b16 %v651
        %v822 = vunpack.c.l.b16 %v652
        %v823 = vunpack.c.h.b16 %v652
        %v824 = vunpack.c.l.b16 %v653
        %v825 = vunpack.c.h.b16 %v653
        %v826 = vunpack.c.l.b16 %v654
        %v827 = vunpack.c.h.b16 %v654
        %v828 = vunpack.c.l.b16 %v655
        %v829 = vunpack.c.h.b16 %v655
        %v830 = vunpack.c.l.b16 %v656
        %v831 = vunpack.c.h.b16 %v656
        %v832 = vunpack.c.l.b16 %v657
        %v833 = vunpack.c.h.b16 %v657
        %v834 = vunpack.c.l.b16 %v658
        %v835 = vunpack.c.h.b16 %v658
        %v836 = vunpack.c.l.b16 %v659
        %v837 = vunpack.c.h.b16 %v659
        %v838 = vunpack.c.l.b16 %v660
        %v839 = vunpack.c.h.b16 %v660
        %v840 = vunpack.c.l.b16 %v661
        %v841 = vunpack.c.h.b16 %v661
        %v842 = vunpack.c.l.b16 %v662
        %v843 = vunpack.c.h.b16 %v662
        %v844 = vunpack.c.l.b16 %v663
        %v845 = vunpack.c.h.b16 %v663
        %v846 = vunpack.c.l.b16 %v664
        %v847 = vunpack.c.h.b16 %v664
        %v848 = vunpack.c.l.b16 %v665
        %v849 = vunpack.c.h.b16 %v665
        %v850 = vunpack.c.l.b16 %v666
        %v851 = vunpack.c.h.b16 %v666
        %v852 = vunpack.c.l.b16 %v667
        %v853 = vunpack.c.h.b16 %v667
        %v854 = vunpack.c.l.b16 %v668
        %v855 = vunpack.c.h.b16 %v668
        %v856 = vunpack.c.l.b16 %v669
        %v857 = vunpack.c.h.b16 %v669
        %v858 = vunpack.c.l.b16 %v670
        %v859 = vunpack.c.h.b16 %v670
        %v860 = vunpack.c.l.b16 %v671
        %v861 = vunpack.c.h.b16 %v671
        %v862 = vunpack.c.l.b16 %v672
        %v863 = vunpack.c.h.b16 %v672
        %v864 = vunpack.c.l.b16 %v673
        %v865 = vunpack.c.h.b16 %v673
        %v866 = vunpack.c.l.b16 %v674
        %v867 = vunpack.c.h.b16 %v674
        %v868 = vunpack.c.l.b16 %v675
        %v869 = vunpack.c.h.b16 %v675
        %v870 = vunpack.c.l.b16 %v676
        %v871 = vunpack.c.h.b16 %v676
        %v872 = vunpack.c.l.b16 %v677
        %v873 = vunpack.c.h.b16 %v677
        %v874 = vunpack.c.l.b16 %v678
        %v875 = vunpack.c.h.b16 %v678
        %v876 = vunpack.c.l.b16 %v679
        %v877 = vunpack.c.h.b16 %v679
        %v878 = vunpack.c.l.b16 %v680
        %v879 = vunpack.c.h.b16 %v680
        %v880 = vunpack.c.l.b16 %v681
        %v881 = vunpack.c.h.b16 %v681
        %v882 = vunpack.c.l.b16 %v682
        %v883 = vunpack.c.h.b16 %v682
        %v884 = vunpack.c.l.b16 %v683
        %v885 = vunpack.c.h.b16 %v683
        %v886 = vunpack.c.l.b16 %v684
        %v887 = vunpack.c.h.b16 %v684
        %v888 = vunpack.c.l.b16 %v685
        %v889 = vunpack.c.h.b16 %v685
        %v890 = vunpack.c.l.b16 %v686
        %v891 = vunpack.c.h.b16 %v686
        %v892 = vunpack.c.l.b16 %v687
        %v893 = vunpack.c.h.b16 %v687
        %v894 = vunpack.c.l.b16 %v688
        %v895 = vunpack.c.h.b16 %v688
        %v896 = vunpack.c.l.b16 %v689
        %v897 = vunpack.c.h.b16 %v689
        %v898 = vunpack.c.l.b16 %v690
        %v899 = vunpack.c.h.b16 %v690
        %v900 = vunpack.c.l.b16 %v691
        %v901 = vunpack.c.h.b16 %v691
        %v902 = vpack.c.b16 %v782, %v774
        %v903 = vpack.c.b16 %v783, %v775
        %v904 = vpack.c.b16 %v784, %v776
        %v905 = vpack.c.b16 %v785, %v777
        %v906 = vpack.c.b16 %v786, %v778
        %v907 = vpack.c.b16 %v787, %v779
        %v908 = vpack.c.b16 %v788, %v780
        %v909 = vpack.c.b16 %v789, %v781
        %v910 = vpack.c.b16 %v798, %v790
        %v911 = vpack.c.b16 %v799, %v791
        %v912 = vpack.c.b16 %v800, %v792
        %v913 = vpack.c.b16 %v801, %v793
        %v914 = vpack.c.b16 %v802, %v794
        %v915 = vpack.c.b16 %v803, %v795
        %v916 = vpack.c.b16 %v804, %v796
        %v917 = vpack.c.b16 %v805, %v797
        %v918 = vpack.c.b16 %v814, %v806
        %v919 = vpack.c.b16 %v815, %v807
        %v920 = vpack.c.b16 %v816, %v808
        %v921 = vpack.c.b16 %v817, %v809
        %v922 = vpack.c.b16 %v818, %v810
        %v923 = vpack.c.b16 %v819, %v811
        %v924 = vpack.c.b16 %v820, %v812
        %v925 = vpack.c.b16 %v821, %v813
        %v926 = vpack.c.b16 %v830, %v822
        %v927 = vpack.c.b16 %v831, %v823
        %v928 = vpack.c.b16 %v832, %v824
        %v929 = vpack.c.b16 %v833, %v825
        %v930 = vpack.c.b16 %v834, %v826
        %v931 = vpack.c.b16 %v835, %v827
        %v932 = vpack.c.b16 %v836, %v828
        %v933 = vpack.c.b16 %v837, %v829
        %v934 = vpack.c.b16 %v846, %v838
        %v935 = vpack.c.b16 %v847, %v839
        %v936 = vpack.c.b16 %v848, %v840
        %v937 = vpack.c.b16 %v849, %v841
        %v938 = vpack.c.b16 %v850, %v842
        %v939 = vpack.c.b16 %v851, %v843
        %v940 = vpack.c.b16 %v852, %v844
        %v941 = vpack.c.b16 %v853, %v845
        %v942 = vpack.c.b16 %v862, %v854
        %v943 = vpack.c.b16 %v863, %v855
        %v944 = vpack.c.b16 %v864, %v856
        %v945 = vpack.c.b16 %v865, %v857
        %v946 = vpack.c.b16 %v866, %v858
        %v947 = vpack.c.b16 %v867, %v859
        %v948 = vpack.c.b16 %v868, %v860
        %v949 = vpack.c.b16 %v869, %v861
        %v950 = vpack.c.b16 %v878, %v870
        %v951 = vpack.c.b16 %v879, %v871
        %v952 = vpack.c.b16 %v880, %v872
        %v953 = vpack.c.b16 %v881, %v873
        %v954 = vpack.c.b16 %v882, %v874
        %v955 = vpack.c.b16 %v883, %v875
        %v956 = vpack.c.b16 %v884, %v876
        %v957 = vpack.c.b16 %v885, %v877
        %v958 = vpack.c.b16 %v894, %v886
        %v959 = vpack.c.b16 %v895, %v887
        %v960 = vpack.c.b16 %v896, %v888
        %v961 = vpack.c.b16 %v897, %v889
        %v962 = vpack.c.b16 %v898, %v890
        %v963 = vpack.c.b16 %v899, %v891
        %v964 = vpack.c.b16 %v900, %v892
        %v965 = vpack.c.b16 %v901, %v893
        %1030 = vmatpush.bf16.msra.mxu0 %v958
        %1031 = vmatpush.bf16.msra.mxu0 %v950
        %1032 = vmatpush.bf16.msra.mxu0 %v942
        %1033 = vmatpush.bf16.msra.mxu0 %v934
        %1034 = vmatpush.bf16.msra.mxu0 %v926
        %1035 = vmatpush.bf16.msra.mxu0 %v918
        %1036 = vmatpush.bf16.msra.mxu0 %v910
        %1037 = vmatpush.bf16.msra.mxu0 %v902
        %1038 = vmatmul.bf16.gmra.mxu0 %v620
        %v1039 = vpop.f32.mrf.mxu0
        %v1040 = vadd.f32 %v694, %v1039
        %v1041 = vpop.f32.mrf.mxu0
        %v1042 = vadd.f32 %v694, %v1041
        %1043 = vmatmul.bf16.gmra.mxu0 %v621
        %v1044 = vpop.f32.mrf.mxu0
        %v1045 = vadd.f32 %v694, %v1044
        %v1046 = vpop.f32.mrf.mxu0
        %v1047 = vadd.f32 %v694, %v1046
        %1048 = vmatmul.bf16.gmra.mxu0 %v622
        %v1049 = vpop.f32.mrf.mxu0
        %v1050 = vadd.f32 %v694, %v1049
        %v1051 = vpop.f32.mrf.mxu0
        %v1052 = vadd.f32 %v694, %v1051
        %1053 = vmatmul.bf16.gmra.mxu0 %v623
        %v1054 = vpop.f32.mrf.mxu0
        %v1055 = vadd.f32 %v694, %v1054
        %v1056 = vpop.f32.mrf.mxu0
        %v1057 = vadd.f32 %v694, %v1056
        %1058 = vmatmul.bf16.gmra.mxu0 %v624
        %v1059 = vpop.f32.mrf.mxu0
        %v1060 = vadd.f32 %v694, %v1059
        %v1061 = vpop.f32.mrf.mxu0
        %v1062 = vadd.f32 %v694, %v1061
        %1063 = vmatmul.bf16.gmra.mxu0 %v625
        %v1064 = vpop.f32.mrf.mxu0
        %v1065 = vadd.f32 %v694, %v1064
        %v1066 = vpop.f32.mrf.mxu0
        %v1067 = vadd.f32 %v694, %v1066
        %1068 = vmatmul.bf16.gmra.mxu0 %v626
        %v1069 = vpop.f32.mrf.mxu0
        %v1070 = vadd.f32 %v694, %v1069
        %v1071 = vpop.f32.mrf.mxu0
        %v1072 = vadd.f32 %v694, %v1071
        %1073 = vmatmul.bf16.gmra.mxu0 %v627
        %v1074 = vpop.f32.mrf.mxu0
        %v1075 = vadd.f32 %v694, %v1074
        %v1076 = vpop.f32.mrf.mxu0
        %v1077 = vadd.f32 %v694, %v1076
        %1078 = vdwg.mxu0
        %1079 = vmatpush.bf16.msra.mxu0 %v959
        %1080 = vmatpush.bf16.msra.mxu0 %v951
        %1081 = vmatpush.bf16.msra.mxu0 %v943
        %1082 = vmatpush.bf16.msra.mxu0 %v935
        %1083 = vmatpush.bf16.msra.mxu0 %v927
        %1084 = vmatpush.bf16.msra.mxu0 %v919
        %1085 = vmatpush.bf16.msra.mxu0 %v911
        %1086 = vmatpush.bf16.msra.mxu0 %v903
        %1087 = vmatmul.bf16.gmra.mxu0 %v620
        %v1088 = vpop.f32.mrf.mxu0
        %v1089 = vadd.f32 %v695, %v1088
        %v1090 = vpop.f32.mrf.mxu0
        %v1091 = vadd.f32 %v695, %v1090
        %1092 = vmatmul.bf16.gmra.mxu0 %v621
        %v1093 = vpop.f32.mrf.mxu0
        %v1094 = vadd.f32 %v695, %v1093
        %v1095 = vpop.f32.mrf.mxu0
        %v1096 = vadd.f32 %v695, %v1095
        %1097 = vmatmul.bf16.gmra.mxu0 %v622
        %v1098 = vpop.f32.mrf.mxu0
        %v1099 = vadd.f32 %v695, %v1098
        %v1100 = vpop.f32.mrf.mxu0
        %v1101 = vadd.f32 %v695, %v1100
        %1102 = vmatmul.bf16.gmra.mxu0 %v623
        %v1103 = vpop.f32.mrf.mxu0
        %v1104 = vadd.f32 %v695, %v1103
        %v1105 = vpop.f32.mrf.mxu0
        %v1106 = vadd.f32 %v695, %v1105
        %1107 = vmatmul.bf16.gmra.mxu0 %v624
        %v1108 = vpop.f32.mrf.mxu0
        %v1109 = vadd.f32 %v695, %v1108
        %v1110 = vpop.f32.mrf.mxu0
        %v1111 = vadd.f32 %v695, %v1110
        %1112 = vmatmul.bf16.gmra.mxu0 %v625
        %v1113 = vpop.f32.mrf.mxu0
        %v1114 = vadd.f32 %v695, %v1113
        %v1115 = vpop.f32.mrf.mxu0
        %v1116 = vadd.f32 %v695, %v1115
        %1117 = vmatmul.bf16.gmra.mxu0 %v626
        %v1118 = vpop.f32.mrf.mxu0
        %v1119 = vadd.f32 %v695, %v1118
        %v1120 = vpop.f32.mrf.mxu0
        %v1121 = vadd.f32 %v695, %v1120
        %1122 = vmatmul.bf16.gmra.mxu0 %v627
        %v1123 = vpop.f32.mrf.mxu0
        %v1124 = vadd.f32 %v695, %v1123
        %v1125 = vpop.f32.mrf.mxu0
        %v1126 = vadd.f32 %v695, %v1125
        %1127 = vdwg.mxu0
        %1128 = vmatpush.bf16.msra.mxu0 %v960
        %1129 = vmatpush.bf16.msra.mxu0 %v952
        %1130 = vmatpush.bf16.msra.mxu0 %v944
        %1131 = vmatpush.bf16.msra.mxu0 %v936
        %1132 = vmatpush.bf16.msra.mxu0 %v928
        %1133 = vmatpush.bf16.msra.mxu0 %v920
        %1134 = vmatpush.bf16.msra.mxu0 %v912
        %1135 = vmatpush.bf16.msra.mxu0 %v904
        %1136 = vmatmul.bf16.gmra.mxu0 %v620
        %v1137 = vpop.f32.mrf.mxu0
        %v1138 = vadd.f32 %v696, %v1137
        %v1139 = vpop.f32.mrf.mxu0
        %v1140 = vadd.f32 %v696, %v1139
        %1141 = vmatmul.bf16.gmra.mxu0 %v621
        %v1142 = vpop.f32.mrf.mxu0
        %v1143 = vadd.f32 %v696, %v1142
        %v1144 = vpop.f32.mrf.mxu0
        %v1145 = vadd.f32 %v696, %v1144
        %1146 = vmatmul.bf16.gmra.mxu0 %v622
        %v1147 = vpop.f32.mrf.mxu0
        %v1148 = vadd.f32 %v696, %v1147
        %v1149 = vpop.f32.mrf.mxu0
        %v1150 = vadd.f32 %v696, %v1149
        %1151 = vmatmul.bf16.gmra.mxu0 %v623
        %v1152 = vpop.f32.mrf.mxu0
        %v1153 = vadd.f32 %v696, %v1152
        %v1154 = vpop.f32.mrf.mxu0
        %v1155 = vadd.f32 %v696, %v1154
        %1156 = vmatmul.bf16.gmra.mxu0 %v624
        %v1157 = vpop.f32.mrf.mxu0
        %v1158 = vadd.f32 %v696, %v1157
        %v1159 = vpop.f32.mrf.mxu0
        %v1160 = vadd.f32 %v696, %v1159
        %1161 = vmatmul.bf16.gmra.mxu0 %v625
        %v1162 = vpop.f32.mrf.mxu0
        %v1163 = vadd.f32 %v696, %v1162
        %v1164 = vpop.f32.mrf.mxu0
        %v1165 = vadd.f32 %v696, %v1164
        %1166 = vmatmul.bf16.gmra.mxu0 %v626
        %v1167 = vpop.f32.mrf.mxu0
        %v1168 = vadd.f32 %v696, %v1167
        %v1169 = vpop.f32.mrf.mxu0
        %v1170 = vadd.f32 %v696, %v1169
        %1171 = vmatmul.bf16.gmra.mxu0 %v627
        %v1172 = vpop.f32.mrf.mxu0
        %v1173 = vadd.f32 %v696, %v1172
        %v1174 = vpop.f32.mrf.mxu0
        %v1175 = vadd.f32 %v696, %v1174
        %1176 = vdwg.mxu0
        %1177 = vmatpush.bf16.msra.mxu0 %v961
        %1178 = vmatpush.bf16.msra.mxu0 %v953
        %1179 = vmatpush.bf16.msra.mxu0 %v945
        %1180 = vmatpush.bf16.msra.mxu0 %v937
        %1181 = vmatpush.bf16.msra.mxu0 %v929
        %1182 = vmatpush.bf16.msra.mxu0 %v921
        %1183 = vmatpush.bf16.msra.mxu0 %v913
        %1184 = vmatpush.bf16.msra.mxu0 %v905
        %1185 = vmatmul.bf16.gmra.mxu0 %v620
        %v1186 = vpop.f32.mrf.mxu0
        %v1187 = vadd.f32 %v697, %v1186
        %v1188 = vpop.f32.mrf.mxu0
        %v1189 = vadd.f32 %v697, %v1188
        %1190 = vmatmul.bf16.gmra.mxu0 %v621
        %v1191 = vpop.f32.mrf.mxu0
        %v1192 = vadd.f32 %v697, %v1191
        %v1193 = vpop.f32.mrf.mxu0
        %v1194 = vadd.f32 %v697, %v1193
        %1195 = vmatmul.bf16.gmra.mxu0 %v622
        %v1196 = vpop.f32.mrf.mxu0
        %v1197 = vadd.f32 %v697, %v1196
        %v1198 = vpop.f32.mrf.mxu0
        %v1199 = vadd.f32 %v697, %v1198
        %1200 = vmatmul.bf16.gmra.mxu0 %v623
        %v1201 = vpop.f32.mrf.mxu0
        %v1202 = vadd.f32 %v697, %v1201
        %v1203 = vpop.f32.mrf.mxu0
        %v1204 = vadd.f32 %v697, %v1203
        %1205 = vmatmul.bf16.gmra.mxu0 %v624
        %v1206 = vpop.f32.mrf.mxu0
        %v1207 = vadd.f32 %v697, %v1206
        %v1208 = vpop.f32.mrf.mxu0
        %v1209 = vadd.f32 %v697, %v1208
        %1210 = vmatmul.bf16.gmra.mxu0 %v625
        %v1211 = vpop.f32.mrf.mxu0
        %v1212 = vadd.f32 %v697, %v1211
        %v1213 = vpop.f32.mrf.mxu0
        %v1214 = vadd.f32 %v697, %v1213
        %1215 = vmatmul.bf16.gmra.mxu0 %v626
        %v1216 = vpop.f32.mrf.mxu0
        %v1217 = vadd.f32 %v697, %v1216
        %v1218 = vpop.f32.mrf.mxu0
        %v1219 = vadd.f32 %v697, %v1218
        %1220 = vmatmul.bf16.gmra.mxu0 %v627
        %v1221 = vpop.f32.mrf.mxu0
        %v1222 = vadd.f32 %v697, %v1221
        %v1223 = vpop.f32.mrf.mxu0
        %v1224 = vadd.f32 %v697, %v1223
        %1225 = vdwg.mxu0
        %1226 = vmatpush.bf16.msra.mxu0 %v962
        %1227 = vmatpush.bf16.msra.mxu0 %v954
        %1228 = vmatpush.bf16.msra.mxu0 %v946
        %1229 = vmatpush.bf16.msra.mxu0 %v938
        %1230 = vmatpush.bf16.msra.mxu0 %v930
        %1231 = vmatpush.bf16.msra.mxu0 %v922
        %1232 = vmatpush.bf16.msra.mxu0 %v914
        %1233 = vmatpush.bf16.msra.mxu0 %v906
        %1234 = vmatmul.bf16.gmra.mxu0 %v620
        %v1235 = vpop.f32.mrf.mxu0
        %v1236 = vadd.f32 %v698, %v1235
        %v1237 = vpop.f32.mrf.mxu0
        %v1238 = vadd.f32 %v698, %v1237
        %1239 = vmatmul.bf16.gmra.mxu0 %v621
        %v1240 = vpop.f32.mrf.mxu0
        %v1241 = vadd.f32 %v698, %v1240
        %v1242 = vpop.f32.mrf.mxu0
        %v1243 = vadd.f32 %v698, %v1242
        %1244 = vmatmul.bf16.gmra.mxu0 %v622
        %v1245 = vpop.f32.mrf.mxu0
        %v1246 = vadd.f32 %v698, %v1245
        %v1247 = vpop.f32.mrf.mxu0
        %v1248 = vadd.f32 %v698, %v1247
        %1249 = vmatmul.bf16.gmra.mxu0 %v623
        %v1250 = vpop.f32.mrf.mxu0
        %v1251 = vadd.f32 %v698, %v1250
        %v1252 = vpop.f32.mrf.mxu0
        %v1253 = vadd.f32 %v698, %v1252
        %1254 = vmatmul.bf16.gmra.mxu0 %v624
        %v1255 = vpop.f32.mrf.mxu0
        %v1256 = vadd.f32 %v698, %v1255
        %v1257 = vpop.f32.mrf.mxu0
        %v1258 = vadd.f32 %v698, %v1257
        %1259 = vmatmul.bf16.gmra.mxu0 %v625
        %v1260 = vpop.f32.mrf.mxu0
        %v1261 = vadd.f32 %v698, %v1260
        %v1262 = vpop.f32.mrf.mxu0
        %v1263 = vadd.f32 %v698, %v1262
        %1264 = vmatmul.bf16.gmra.mxu0 %v626
        %v1265 = vpop.f32.mrf.mxu0
        %v1266 = vadd.f32 %v698, %v1265
        %v1267 = vpop.f32.mrf.mxu0
        %v1268 = vadd.f32 %v698, %v1267
        %1269 = vmatmul.bf16.gmra.mxu0 %v627
        %v1270 = vpop.f32.mrf.mxu0
        %v1271 = vadd.f32 %v698, %v1270
        %v1272 = vpop.f32.mrf.mxu0
        %v1273 = vadd.f32 %v698, %v1272
        %1274 = vdwg.mxu0
        %1275 = vmatpush.bf16.msra.mxu0 %v963
        %1276 = vmatpush.bf16.msra.mxu0 %v955
        %1277 = vmatpush.bf16.msra.mxu0 %v947
        %1278 = vmatpush.bf16.msra.mxu0 %v939
        %1279 = vmatpush.bf16.msra.mxu0 %v931
        %1280 = vmatpush.bf16.msra.mxu0 %v923
        %1281 = vmatpush.bf16.msra.mxu0 %v915
        %1282 = vmatpush.bf16.msra.mxu0 %v907
        %1283 = vmatmul.bf16.gmra.mxu0 %v620
        %v1284 = vpop.f32.mrf.mxu0
        %v1285 = vadd.f32 %v699, %v1284
        %v1286 = vpop.f32.mrf.mxu0
        %v1287 = vadd.f32 %v699, %v1286
        %1288 = vmatmul.bf16.gmra.mxu0 %v621
        %v1289 = vpop.f32.mrf.mxu0
        %v1290 = vadd.f32 %v699, %v1289
        %v1291 = vpop.f32.mrf.mxu0
        %v1292 = vadd.f32 %v699, %v1291
        %1293 = vmatmul.bf16.gmra.mxu0 %v622
        %v1294 = vpop.f32.mrf.mxu0
        %v1295 = vadd.f32 %v699, %v1294
        %v1296 = vpop.f32.mrf.mxu0
        %v1297 = vadd.f32 %v699, %v1296
        %1298 = vmatmul.bf16.gmra.mxu0 %v623
        %v1299 = vpop.f32.mrf.mxu0
        %v1300 = vadd.f32 %v699, %v1299
        %v1301 = vpop.f32.mrf.mxu0
        %v1302 = vadd.f32 %v699, %v1301
        %1303 = vmatmul.bf16.gmra.mxu0 %v624
        %v1304 = vpop.f32.mrf.mxu0
        %v1305 = vadd.f32 %v699, %v1304
        %v1306 = vpop.f32.mrf.mxu0
        %v1307 = vadd.f32 %v699, %v1306
        %1308 = vmatmul.bf16.gmra.mxu0 %v625
        %v1309 = vpop.f32.mrf.mxu0
        %v1310 = vadd.f32 %v699, %v1309
        %v1311 = vpop.f32.mrf.mxu0
        %v1312 = vadd.f32 %v699, %v1311
        %1313 = vmatmul.bf16.gmra.mxu0 %v626
        %v1314 = vpop.f32.mrf.mxu0
        %v1315 = vadd.f32 %v699, %v1314
        %v1316 = vpop.f32.mrf.mxu0
        %v1317 = vadd.f32 %v699, %v1316
        %1318 = vmatmul.bf16.gmra.mxu0 %v627
        %v1319 = vpop.f32.mrf.mxu0
        %v1320 = vadd.f32 %v699, %v1319
        %v1321 = vpop.f32.mrf.mxu0
        %v1322 = vadd.f32 %v699, %v1321
        %1323 = vdwg.mxu0
        %1324 = vmatpush.bf16.msra.mxu0 %v964
        %1325 = vmatpush.bf16.msra.mxu0 %v956
        %1326 = vmatpush.bf16.msra.mxu0 %v948
        %1327 = vmatpush.bf16.msra.mxu0 %v940
        %1328 = vmatpush.bf16.msra.mxu0 %v932
        %1329 = vmatpush.bf16.msra.mxu0 %v924
        %1330 = vmatpush.bf16.msra.mxu0 %v916
        %1331 = vmatpush.bf16.msra.mxu0 %v908
        %1332 = vmatmul.bf16.gmra.mxu0 %v620
        %v1333 = vpop.f32.mrf.mxu0
        %v1334 = vadd.f32 %v700, %v1333
        %v1335 = vpop.f32.mrf.mxu0
        %v1336 = vadd.f32 %v700, %v1335
        %1337 = vmatmul.bf16.gmra.mxu0 %v621
        %v1338 = vpop.f32.mrf.mxu0
        %v1339 = vadd.f32 %v700, %v1338
        %v1340 = vpop.f32.mrf.mxu0
        %v1341 = vadd.f32 %v700, %v1340
        %1342 = vmatmul.bf16.gmra.mxu0 %v622
        %v1343 = vpop.f32.mrf.mxu0
        %v1344 = vadd.f32 %v700, %v1343
        %v1345 = vpop.f32.mrf.mxu0
        %v1346 = vadd.f32 %v700, %v1345
        %1347 = vmatmul.bf16.gmra.mxu0 %v623
        %v1348 = vpop.f32.mrf.mxu0
        %v1349 = vadd.f32 %v700, %v1348
        %v1350 = vpop.f32.mrf.mxu0
        %v1351 = vadd.f32 %v700, %v1350
        %1352 = vmatmul.bf16.gmra.mxu0 %v624
        %v1353 = vpop.f32.mrf.mxu0
        %v1354 = vadd.f32 %v700, %v1353
        %v1355 = vpop.f32.mrf.mxu0
        %v1356 = vadd.f32 %v700, %v1355
        %1357 = vmatmul.bf16.gmra.mxu0 %v625
        %v1358 = vpop.f32.mrf.mxu0
        %v1359 = vadd.f32 %v700, %v1358
        %v1360 = vpop.f32.mrf.mxu0
        %v1361 = vadd.f32 %v700, %v1360
        %1362 = vmatmul.bf16.gmra.mxu0 %v626
        %v1363 = vpop.f32.mrf.mxu0
        %v1364 = vadd.f32 %v700, %v1363
        %v1365 = vpop.f32.mrf.mxu0
        %v1366 = vadd.f32 %v700, %v1365
        %1367 = vmatmul.bf16.gmra.mxu0 %v627
        %v1368 = vpop.f32.mrf.mxu0
        %v1369 = vadd.f32 %v700, %v1368
        %v1370 = vpop.f32.mrf.mxu0
        %v1371 = vadd.f32 %v700, %v1370
        %1372 = vdwg.mxu0
        %1373 = vmatpush.bf16.msra.mxu0 %v965
        %1374 = vmatpush.bf16.msra.mxu0 %v957
        %1375 = vmatpush.bf16.msra.mxu0 %v949
        %1376 = vmatpush.bf16.msra.mxu0 %v941
        %1377 = vmatpush.bf16.msra.mxu0 %v933
        %1378 = vmatpush.bf16.msra.mxu0 %v925
        %1379 = vmatpush.bf16.msra.mxu0 %v917
        %1380 = vmatpush.bf16.msra.mxu0 %v909
        %1381 = vmatmul.bf16.gmra.mxu0 %v620
        %v1382 = vpop.f32.mrf.mxu0
        %v1383 = vadd.f32 %v701, %v1382
        %v1384 = vpop.f32.mrf.mxu0
        %v1385 = vadd.f32 %v701, %v1384
        %1386 = vmatmul.bf16.gmra.mxu0 %v621
        %v1387 = vpop.f32.mrf.mxu0
        %v1388 = vadd.f32 %v701, %v1387
        %v1389 = vpop.f32.mrf.mxu0
        %v1390 = vadd.f32 %v701, %v1389
        %1391 = vmatmul.bf16.gmra.mxu0 %v622
        %v1392 = vpop.f32.mrf.mxu0
        %v1393 = vadd.f32 %v701, %v1392
        %v1394 = vpop.f32.mrf.mxu0
        %v1395 = vadd.f32 %v701, %v1394
        %1396 = vmatmul.bf16.gmra.mxu0 %v623
        %v1397 = vpop.f32.mrf.mxu0
        %v1398 = vadd.f32 %v701, %v1397
        %v1399 = vpop.f32.mrf.mxu0
        %v1400 = vadd.f32 %v701, %v1399
        %1401 = vmatmul.bf16.gmra.mxu0 %v624
        %v1402 = vpop.f32.mrf.mxu0
        %v1403 = vadd.f32 %v701, %v1402
        %v1404 = vpop.f32.mrf.mxu0
        %v1405 = vadd.f32 %v701, %v1404
        %1406 = vmatmul.bf16.gmra.mxu0 %v625
        %v1407 = vpop.f32.mrf.mxu0
        %v1408 = vadd.f32 %v701, %v1407
        %v1409 = vpop.f32.mrf.mxu0
        %v1410 = vadd.f32 %v701, %v1409
        %1411 = vmatmul.bf16.gmra.mxu0 %v626
        %v1412 = vpop.f32.mrf.mxu0
        %v1413 = vadd.f32 %v701, %v1412
        %v1414 = vpop.f32.mrf.mxu0
        %v1415 = vadd.f32 %v701, %v1414
        %1416 = vmatmul.bf16.gmra.mxu0 %v627
        %v1417 = vpop.f32.mrf.mxu0
        %v1418 = vadd.f32 %v701, %v1417
        %v1419 = vpop.f32.mrf.mxu0
        %v1420 = vadd.f32 %v701, %v1419
        %1421 = vdwg.mxu0
        %v1422 = vmax.f32 %v1040, 0.0
        %v1423 = vmax.f32 %v1089, 0.0
        %v1424 = vmax.f32 %v1138, 0.0
        %v1425 = vmax.f32 %v1187, 0.0
        %v1426 = vmax.f32 %v1236, 0.0
        %v1427 = vmax.f32 %v1285, 0.0
        %v1428 = vmax.f32 %v1334, 0.0
        %v1429 = vmax.f32 %v1383, 0.0
        %v1430 = vmax.f32 %v1042, 0.0
        %v1431 = vmax.f32 %v1091, 0.0
        %v1432 = vmax.f32 %v1140, 0.0
        %v1433 = vmax.f32 %v1189, 0.0
        %v1434 = vmax.f32 %v1238, 0.0
        %v1435 = vmax.f32 %v1287, 0.0
        %v1436 = vmax.f32 %v1336, 0.0
        %v1437 = vmax.f32 %v1385, 0.0
        %v1438 = vmax.f32 %v1045, 0.0
        %v1439 = vmax.f32 %v1094, 0.0
        %v1440 = vmax.f32 %v1143, 0.0
        %v1441 = vmax.f32 %v1192, 0.0
        %v1442 = vmax.f32 %v1241, 0.0
        %v1443 = vmax.f32 %v1290, 0.0
        %v1444 = vmax.f32 %v1339, 0.0
        %v1445 = vmax.f32 %v1388, 0.0
        %v1446 = vmax.f32 %v1047, 0.0
        %v1447 = vmax.f32 %v1096, 0.0
        %v1448 = vmax.f32 %v1145, 0.0
        %v1449 = vmax.f32 %v1194, 0.0
        %v1450 = vmax.f32 %v1243, 0.0
        %v1451 = vmax.f32 %v1292, 0.0
        %v1452 = vmax.f32 %v1341, 0.0
        %v1453 = vmax.f32 %v1390, 0.0
        %v1454 = vmax.f32 %v1050, 0.0
        %v1455 = vmax.f32 %v1099, 0.0
        %v1456 = vmax.f32 %v1148, 0.0
        %v1457 = vmax.f32 %v1197, 0.0
        %v1458 = vmax.f32 %v1246, 0.0
        %v1459 = vmax.f32 %v1295, 0.0
        %v1460 = vmax.f32 %v1344, 0.0
        %v1461 = vmax.f32 %v1393, 0.0
        %v1462 = vmax.f32 %v1052, 0.0
        %v1463 = vmax.f32 %v1101, 0.0
        %v1464 = vmax.f32 %v1150, 0.0
        %v1465 = vmax.f32 %v1199, 0.0
        %v1466 = vmax.f32 %v1248, 0.0
        %v1467 = vmax.f32 %v1297, 0.0
        %v1468 = vmax.f32 %v1346, 0.0
        %v1469 = vmax.f32 %v1395, 0.0
        %v1470 = vmax.f32 %v1055, 0.0
        %v1471 = vmax.f32 %v1104, 0.0
        %v1472 = vmax.f32 %v1153, 0.0
        %v1473 = vmax.f32 %v1202, 0.0
        %v1474 = vmax.f32 %v1251, 0.0
        %v1475 = vmax.f32 %v1300, 0.0
        %v1476 = vmax.f32 %v1349, 0.0
        %v1477 = vmax.f32 %v1398, 0.0
        %v1478 = vmax.f32 %v1057, 0.0
        %v1479 = vmax.f32 %v1106, 0.0
        %v1480 = vmax.f32 %v1155, 0.0
        %v1481 = vmax.f32 %v1204, 0.0
        %v1482 = vmax.f32 %v1253, 0.0
        %v1483 = vmax.f32 %v1302, 0.0
        %v1484 = vmax.f32 %v1351, 0.0
        %v1485 = vmax.f32 %v1400, 0.0
        %v1486 = vmax.f32 %v1060, 0.0
        %v1487 = vmax.f32 %v1109, 0.0
        %v1488 = vmax.f32 %v1158, 0.0
        %v1489 = vmax.f32 %v1207, 0.0
        %v1490 = vmax.f32 %v1256, 0.0
        %v1491 = vmax.f32 %v1305, 0.0
        %v1492 = vmax.f32 %v1354, 0.0
        %v1493 = vmax.f32 %v1403, 0.0
        %v1494 = vmax.f32 %v1062, 0.0
        %v1495 = vmax.f32 %v1111, 0.0
        %v1496 = vmax.f32 %v1160, 0.0
        %v1497 = vmax.f32 %v1209, 0.0
        %v1498 = vmax.f32 %v1258, 0.0
        %v1499 = vmax.f32 %v1307, 0.0
        %v1500 = vmax.f32 %v1356, 0.0
        %v1501 = vmax.f32 %v1405, 0.0
        %v1502 = vmax.f32 %v1065, 0.0
        %v1503 = vmax.f32 %v1114, 0.0
        %v1504 = vmax.f32 %v1163, 0.0
        %v1505 = vmax.f32 %v1212, 0.0
        %v1506 = vmax.f32 %v1261, 0.0
        %v1507 = vmax.f32 %v1310, 0.0
        %v1508 = vmax.f32 %v1359, 0.0
        %v1509 = vmax.f32 %v1408, 0.0
        %v1510 = vmax.f32 %v1067, 0.0
        %v1511 = vmax.f32 %v1116, 0.0
        %v1512 = vmax.f32 %v1165, 0.0
        %v1513 = vmax.f32 %v1214, 0.0
        %v1514 = vmax.f32 %v1263, 0.0
        %v1515 = vmax.f32 %v1312, 0.0
        %v1516 = vmax.f32 %v1361, 0.0
        %v1517 = vmax.f32 %v1410, 0.0
        %v1518 = vmax.f32 %v1070, 0.0
        %v1519 = vmax.f32 %v1119, 0.0
        %v1520 = vmax.f32 %v1168, 0.0
        %v1521 = vmax.f32 %v1217, 0.0
        %v1522 = vmax.f32 %v1266, 0.0
        %v1523 = vmax.f32 %v1315, 0.0
        %v1524 = vmax.f32 %v1364, 0.0
        %v1525 = vmax.f32 %v1413, 0.0
        %v1526 = vmax.f32 %v1072, 0.0
        %v1527 = vmax.f32 %v1121, 0.0
        %v1528 = vmax.f32 %v1170, 0.0
        %v1529 = vmax.f32 %v1219, 0.0
        %v1530 = vmax.f32 %v1268, 0.0
        %v1531 = vmax.f32 %v1317, 0.0
        %v1532 = vmax.f32 %v1366, 0.0
        %v1533 = vmax.f32 %v1415, 0.0
        %v1534 = vmax.f32 %v1075, 0.0
        %v1535 = vmax.f32 %v1124, 0.0
        %v1536 = vmax.f32 %v1173, 0.0
        %v1537 = vmax.f32 %v1222, 0.0
        %v1538 = vmax.f32 %v1271, 0.0
        %v1539 = vmax.f32 %v1320, 0.0
        %v1540 = vmax.f32 %v1369, 0.0
        %v1541 = vmax.f32 %v1418, 0.0
        %v1542 = vmax.f32 %v1077, 0.0
        %v1543 = vmax.f32 %v1126, 0.0
        %v1544 = vmax.f32 %v1175, 0.0
        %v1545 = vmax.f32 %v1224, 0.0
        %v1546 = vmax.f32 %v1273, 0.0
        %v1547 = vmax.f32 %v1322, 0.0
        %v1548 = vmax.f32 %v1371, 0.0
        %v1549 = vmax.f32 %v1420, 0.0
        %v1550 = vld [vmem:[%s311] sm:$0xff]
        %v1551 = vmax.f32 %v1422, %v1430
        %v1552 = vmax.f32 %v1551, %v1438
        %v1553 = vmax.f32 %v1552, %v1446
        %v1554 = vmax.f32 %v1553, %v1454
        %v1555 = vmax.f32 %v1554, %v1462
        %v1556 = vmax.f32 %v1555, %v1470
        %v1557 = vmax.f32 %v1556, %v1478
        %v1558 = vmax.f32 %v1557, %v1486
        %v1559 = vmax.f32 %v1558, %v1494
        %v1560 = vmax.f32 %v1559, %v1502
        %v1561 = vmax.f32 %v1560, %v1510
        %v1562 = vmax.f32 %v1561, %v1518
        %v1563 = vmax.f32 %v1562, %v1526
        %v1564 = vmax.f32 %v1563, %v1534
        %v1565 = vmax.f32 %v1564, %v1542
        %v1566 = vrot.slane %v1565, 4
        %v1567 = vmax.f32 %v1565, %v1566
        %v1568 = vrot.slane %v1567, 2
        %v1569 = vmax.f32 %v1567, %v1568
        %v1570 = vrot.slane %v1569, 1
        %v1571 = vmax.f32 %v1569, %v1570
        %v1572 = vmax.f32 %v1423, %v1431
        %v1573 = vmax.f32 %v1572, %v1439
        %v1574 = vmax.f32 %v1573, %v1447
        %v1575 = vmax.f32 %v1574, %v1455
        %v1576 = vmax.f32 %v1575, %v1463
        %v1577 = vmax.f32 %v1576, %v1471
        %v1578 = vmax.f32 %v1577, %v1479
        %v1579 = vmax.f32 %v1578, %v1487
        %v1580 = vmax.f32 %v1579, %v1495
        %v1581 = vmax.f32 %v1580, %v1503
        %v1582 = vmax.f32 %v1581, %v1511
        %v1583 = vmax.f32 %v1582, %v1519
        %v1584 = vmax.f32 %v1583, %v1527
        %v1585 = vmax.f32 %v1584, %v1535
        %v1586 = vmax.f32 %v1585, %v1543
        %v1587 = vrot.slane %v1586, 4
        %v1588 = vmax.f32 %v1586, %v1587
        %v1589 = vrot.slane %v1588, 2
        %v1590 = vmax.f32 %v1588, %v1589
        %v1591 = vrot.slane %v1590, 1
        %v1592 = vmax.f32 %v1590, %v1591
        %v1593 = vmax.f32 %v1424, %v1432
        %v1594 = vmax.f32 %v1593, %v1440
        %v1595 = vmax.f32 %v1594, %v1448
        %v1596 = vmax.f32 %v1595, %v1456
        %v1597 = vmax.f32 %v1596, %v1464
        %v1598 = vmax.f32 %v1597, %v1472
        %v1599 = vmax.f32 %v1598, %v1480
        %v1600 = vmax.f32 %v1599, %v1488
        %v1601 = vmax.f32 %v1600, %v1496
        %v1602 = vmax.f32 %v1601, %v1504
        %v1603 = vmax.f32 %v1602, %v1512
        %v1604 = vmax.f32 %v1603, %v1520
        %v1605 = vmax.f32 %v1604, %v1528
        %v1606 = vmax.f32 %v1605, %v1536
        %v1607 = vmax.f32 %v1606, %v1544
        %v1608 = vrot.slane %v1607, 4
        %v1609 = vmax.f32 %v1607, %v1608
        %v1610 = vrot.slane %v1609, 2
        %v1611 = vmax.f32 %v1609, %v1610
        %v1612 = vrot.slane %v1611, 1
        %v1613 = vmax.f32 %v1611, %v1612
        %v1614 = vmax.f32 %v1425, %v1433
        %v1615 = vmax.f32 %v1614, %v1441
        %v1616 = vmax.f32 %v1615, %v1449
        %v1617 = vmax.f32 %v1616, %v1457
        %v1618 = vmax.f32 %v1617, %v1465
        %v1619 = vmax.f32 %v1618, %v1473
        %v1620 = vmax.f32 %v1619, %v1481
        %v1621 = vmax.f32 %v1620, %v1489
        %v1622 = vmax.f32 %v1621, %v1497
        %v1623 = vmax.f32 %v1622, %v1505
        %v1624 = vmax.f32 %v1623, %v1513
        %v1625 = vmax.f32 %v1624, %v1521
        %v1626 = vmax.f32 %v1625, %v1529
        %v1627 = vmax.f32 %v1626, %v1537
        %v1628 = vmax.f32 %v1627, %v1545
        %v1629 = vrot.slane %v1628, 4
        %v1630 = vmax.f32 %v1628, %v1629
        %v1631 = vrot.slane %v1630, 2
        %v1632 = vmax.f32 %v1630, %v1631
        %v1633 = vrot.slane %v1632, 1
        %v1634 = vmax.f32 %v1632, %v1633
        %v1635 = vmax.f32 %v1426, %v1434
        %v1636 = vmax.f32 %v1635, %v1442
        %v1637 = vmax.f32 %v1636, %v1450
        %v1638 = vmax.f32 %v1637, %v1458
        %v1639 = vmax.f32 %v1638, %v1466
        %v1640 = vmax.f32 %v1639, %v1474
        %v1641 = vmax.f32 %v1640, %v1482
        %v1642 = vmax.f32 %v1641, %v1490
        %v1643 = vmax.f32 %v1642, %v1498
        %v1644 = vmax.f32 %v1643, %v1506
        %v1645 = vmax.f32 %v1644, %v1514
        %v1646 = vmax.f32 %v1645, %v1522
        %v1647 = vmax.f32 %v1646, %v1530
        %v1648 = vmax.f32 %v1647, %v1538
        %v1649 = vmax.f32 %v1648, %v1546
        %v1650 = vrot.slane %v1649, 4
        %v1651 = vmax.f32 %v1649, %v1650
        %v1652 = vrot.slane %v1651, 2
        %v1653 = vmax.f32 %v1651, %v1652
        %v1654 = vrot.slane %v1653, 1
        %v1655 = vmax.f32 %v1653, %v1654
        %v1656 = vmax.f32 %v1427, %v1435
        %v1657 = vmax.f32 %v1656, %v1443
        %v1658 = vmax.f32 %v1657, %v1451
        %v1659 = vmax.f32 %v1658, %v1459
        %v1660 = vmax.f32 %v1659, %v1467
        %v1661 = vmax.f32 %v1660, %v1475
        %v1662 = vmax.f32 %v1661, %v1483
        %v1663 = vmax.f32 %v1662, %v1491
        %v1664 = vmax.f32 %v1663, %v1499
        %v1665 = vmax.f32 %v1664, %v1507
        %v1666 = vmax.f32 %v1665, %v1515
        %v1667 = vmax.f32 %v1666, %v1523
        %v1668 = vmax.f32 %v1667, %v1531
        %v1669 = vmax.f32 %v1668, %v1539
        %v1670 = vmax.f32 %v1669, %v1547
        %v1671 = vrot.slane %v1670, 4
        %v1672 = vmax.f32 %v1670, %v1671
        %v1673 = vrot.slane %v1672, 2
        %v1674 = vmax.f32 %v1672, %v1673
        %v1675 = vrot.slane %v1674, 1
        %v1676 = vmax.f32 %v1674, %v1675
        %v1677 = vmax.f32 %v1428, %v1436
        %v1678 = vmax.f32 %v1677, %v1444
        %v1679 = vmax.f32 %v1678, %v1452
        %v1680 = vmax.f32 %v1679, %v1460
        %v1681 = vmax.f32 %v1680, %v1468
        %v1682 = vmax.f32 %v1681, %v1476
        %v1683 = vmax.f32 %v1682, %v1484
        %v1684 = vmax.f32 %v1683, %v1492
        %v1685 = vmax.f32 %v1684, %v1500
        %v1686 = vmax.f32 %v1685, %v1508
        %v1687 = vmax.f32 %v1686, %v1516
        %v1688 = vmax.f32 %v1687, %v1524
        %v1689 = vmax.f32 %v1688, %v1532
        %v1690 = vmax.f32 %v1689, %v1540
        %v1691 = vmax.f32 %v1690, %v1548
        %v1692 = vrot.slane %v1691, 4
        %v1693 = vmax.f32 %v1691, %v1692
        %v1694 = vrot.slane %v1693, 2
        %v1695 = vmax.f32 %v1693, %v1694
        %v1696 = vrot.slane %v1695, 1
        %v1697 = vmax.f32 %v1695, %v1696
        %v1698 = vmax.f32 %v1429, %v1437
        %v1699 = vmax.f32 %v1698, %v1445
        %v1700 = vmax.f32 %v1699, %v1453
        %v1701 = vmax.f32 %v1700, %v1461
        %v1702 = vmax.f32 %v1701, %v1469
        %v1703 = vmax.f32 %v1702, %v1477
        %v1704 = vmax.f32 %v1703, %v1485
        %v1705 = vmax.f32 %v1704, %v1493
        %v1706 = vmax.f32 %v1705, %v1501
        %v1707 = vmax.f32 %v1706, %v1509
        %v1708 = vmax.f32 %v1707, %v1517
        %v1709 = vmax.f32 %v1708, %v1525
        %v1710 = vmax.f32 %v1709, %v1533
        %v1711 = vmax.f32 %v1710, %v1541
        %v1712 = vmax.f32 %v1711, %v1549
        %v1713 = vrot.slane %v1712, 4
        %v1714 = vmax.f32 %v1712, %v1713
        %v1715 = vrot.slane %v1714, 2
        %v1716 = vmax.f32 %v1714, %v1715
        %v1717 = vrot.slane %v1716, 1
        %v1718 = vmax.f32 %v1716, %v1717
        %v1727 = vrot.slane %v1592, 7
        %v1728 = vrot.slane %v1613, 6
        %v1729 = vrot.slane %v1634, 5
        %v1730 = vrot.slane %v1655, 4
        %v1731 = vrot.slane %v1676, 3
        %v1732 = vrot.slane %v1697, 2
        %v1733 = vrot.slane %v1718, 1
        %v1734 = vsel %vm414, %v1571, %v1727
        %vm1735 = vcmask 1042434
        %v1736 = vsel %vm1735, %v1728, %v1729
        %v1737 = vsel %vm415, %v1734, %v1736
        %vm1738 = vcmask 1044484
        %v1739 = vsel %vm1738, %v1730, %v1731
        %vm1740 = vcmask 1046534
        %v1741 = vsel %vm1740, %v1732, %v1733
        %vm1742 = vcmask 1045508
        %v1743 = vsel %vm1742, %v1739, %v1741
        %vm1744 = vcmask 1043456
        %v1745 = vsel %vm1744, %v1737, %v1743
        %v1747 = vmax.f32 %v1550, %v1745
        %1748 = vst [vmem:[%s311] sm:$0xff] %v1747
        %s1749 = sand.u32 %s196, 1
        %s1750 = scalar_lea.sflag [#allocation4], %s1749
        %s1751 = sand.u32 %s196, 1
        %s1752 = smul.addr %s1751, 8
        %s1753 = scalar_lea.vmem [#allocation5], %s1752
        // Predicated region
        $region57: #{tpu_custom_call.1} parent=47 // pred_check
          %p1754 = pneg %p206
        $region58: #{tpu_custom_call.1} parent=47 // pred_check_branch
          %1756 = sbr.rel (%p1754) target = $region60
        $region59: #{tpu_custom_call.1} parent=47 // pred_region
          %1758 = vsyncadd %s1750, 0
          %s1759 = smul.addr %s26, 8
          %s1760 = scalar_lea.hbm %s7, %s1759
          %s1762 = sshll.u32 %s1753, 4
          %s1763 = int_to_ptr.vmem [resolvable:$true] %s1762
          %s1764 = sshll.u32 %s1760, 4
          %s1765 = int_to_ptr.hbm [resolvable:$true] %s1764
          %1767 = dma.vmem_to_hbm [thread:$0]  %s1763, 128, %s1765, %s1750
        $region60: #{tpu_custom_call.1} parent=47 // pred_fallthru
          _
      $region48: #{tpu_custom_call.1} parent=5 // pred_fallthru
        _
      %p1768 = scmp.le.s32.totalorder 2, %s17
      // Predicated region
      $region61: #{tpu_custom_call.1} parent=5 // pred_check
        %p1769 = pneg %p1768
      $region62: #{tpu_custom_call.1} parent=5 // pred_check_branch
        %1771 = sbr.rel (%p1769) target = $region64
      $region63: #{tpu_custom_call.1} parent=5 // pred_region
        %s1772 = ssub.s32 %s17, 2
        // Predicated region
        $region65: #{tpu_custom_call.1} parent=63 // pred_check
          %p1773 = pneg %p212
        $region66: #{tpu_custom_call.1} parent=63 // pred_check_branch
          %1775 = sbr.rel (%p1773) target = $region68
        $region67: #{tpu_custom_call.1} parent=63 // pred_region
          %s1776 = sand.u32 %s197, 1
          %s1777 = scalar_lea.sflag [#allocation4], %s1776
          %s1778 = sand.u32 %s197, 1
          %s1779 = smul.addr %s1778, 8
          %s1780 = scalar_lea.vmem [#allocation5], %s1779
          %1782 = dma.done %s1777, 128
        $region68: #{tpu_custom_call.1} parent=63 // pred_fallthru
          _
      $region64: #{tpu_custom_call.1} parent=5 // pred_fallthru
        _
    $region6: #{tpu_custom_call.1} parent=1 // loop_footer
      %s21 = sadd.s32 1, %s17
    $region7: #{tpu_custom_call.1} parent=1 // loop_footer_branch
      %16 = sbr.rel target = $region3
    $region8: #{tpu_custom_call.1} parent=1 // loop_exit
      _
    %1783 = vsyncpa [#allocation3], 1
    %s1784 = scalar_lea.sflag [#allocation3], 1
    %1785 = vsyncpa %s1784, 1
    %1786 = vsyncpa [#allocation4], 1
    %s1787 = scalar_lea.sflag [#allocation4], 1
    %1788 = vsyncpa %s1787, 1

</llo_original>
